<compile_context>
chip_gen: v6e
topology: v6e:2x2x1
jax: 0.10.0
libtpu: 0.0.40
codegen_flags: <defaults>
</compile_context>

<pallas_src>
import math
import functools

import jax
import jax.numpy as jnp
from jax import lax
from jax.experimental import pallas as pl
from jax.experimental.pallas import tpu as pltpu


# --------------------------------------------------------------------------- #
# Kernel                                                                      #
# --------------------------------------------------------------------------- #
def mha_kernel(x_ref, wqkv_ref, bqkv_ref, wo_ref, bo_ref, out_ref,
               acc_ref, *x_cast_scratch, head_size, compute_dtype):
    """Shapes seen inside the kernel (Bt = batch tile, G = heads per group):

      x_ref    : (Bt, S, D)            resident across the head-group axis
      wqkv_ref : (1, D, 3*G*Hd)        packed [Q_group | K_group | V_group]
      bqkv_ref : (1, 1, 3*G*Hd)        f32
      wo_ref   : (1, G*Hd, D)          this group's slice of the output proj
      bo_ref   : (1, D)                f32
      out_ref  : (Bt, S, D)
      acc_ref  : (Bt*S, D) f32 scratch, persists across the head-group axis
      x_cast_scratch : optional (Bt*S, D) compute-dtype scratch (hoisted cast)
    """
    bt, s, d = x_ref.shape
    ghd = wqkv_ref.shape[-1] // 3           # G * head_size (lane-aligned)
    g = ghd // head_size
    hg = pl.program_id(1)
    exact = compute_dtype == jnp.float32
    hoist = len(x_cast_scratch) == 1

    @pl.when(hg == 0)
    def _init():
        acc_ref[...] = jnp.zeros_like(acc_ref)
        if hoist:
            # Cast x once per batch tile, not once per head group.
            x_cast_scratch[0][...] = (
                x_ref[...].reshape(bt * s, d).astype(compute_dtype))

    if hoist:
        x2 = x_cast_scratch[0][...]                       # (Bt*S, D) compute
    else:
        x2 = x_ref[...].reshape(bt * s, d)                # already compute dtype

    # Fused Q/K/V projection for this head group: one MXU matmul, f32 accum.
    wqkv = wqkv_ref[0]                                    # (D, 3*G*Hd), HBM dtype
    qkv = jnp.dot(x2, wqkv, preferred_element_type=jnp.float32) + bqkv_ref[0]

    scale = 1.0 / math.sqrt(head_size)

    def to_heads(t):  # (Bt*S, G*Hd) -> (Bt*G, S, Hd)
        return (t.reshape(bt, s, g, head_size)
                 .transpose(0, 2, 1, 3)
                 .reshape(bt * g, s, head_size))

    # Slices start at multiples of G*Hd lanes (128/256-aligned at real sizes).
    q = to_heads((qkv[:, :ghd] * scale).astype(compute_dtype))
    k = to_heads(qkv[:, ghd:2 * ghd].astype(compute_dtype))
    v = to_heads(qkv[:, 2 * ghd:].astype(compute_dtype))

    # Batched scores over the (Bt*G) head axis; contract last dims directly.
    scores = lax.dot_general(
        q, k, dimension_numbers=(((2,), (2,)), ((0,), (0,))),
        preferred_element_type=jnp.float32)               # (Bt*G, S, S) f32

    # Softmax: stats in f32, exp in compute dtype (bf16 EUP path on v6e/v7x).
    m = jnp.max(scores, axis=-1, keepdims=True)
    p = jnp.exp((scores - m).astype(compute_dtype))       # (Bt*G, S, S)
    l = jnp.sum(p, axis=-1, keepdims=True, dtype=jnp.float32)
    # TODO(synk): qkv dropout on attention_probs skipped (eval mode).

    ctx = lax.dot_general(
        p, v, dimension_numbers=(((2,), (1,)), ((0,), (0,))),
        preferred_element_type=jnp.float32)               # (Bt*G, S, Hd) f32
    # Normalize after the p@v matmul (avoids an (S,S) scaling pass).
    if exact:
        ctx = ctx / l
    else:
        ctx = ctx * pl.reciprocal(l, approx=True)

    # Accumulate this group's contribution to the output projection:
    # full lane-width (N = D) matmul with K = G*Hd, no concat / lane relayout.
    ctx2 = (ctx.reshape(bt, g, s, head_size)
               .transpose(0, 2, 1, 3)
               .reshape(bt * s, ghd)).astype(compute_dtype)
    acc_ref[...] += jnp.dot(ctx2, wo_ref[0],
                            preferred_element_type=jnp.float32)

    @pl.when(hg == pl.num_programs(1) - 1)
    def _finalize():
        # TODO(synk): output (hidden) dropout skipped (eval mode).
        out_ref[...] = ((acc_ref[...] + bo_ref[...])
                        .reshape(bt, s, d).astype(out_ref.dtype))


# --------------------------------------------------------------------------- #
# Block-size selection helpers                                                #
# --------------------------------------------------------------------------- #
def pick_group_size(num_heads, head_size, max_group_lanes=256):
    """Heads per grid step. Prefer G*head_size a multiple of 128 lanes and
    <= max_group_lanes (use 128 on v5e, 256 on v6e/v7x)."""
    divisors = [g for g in range(1, num_heads + 1) if num_heads % g == 0]
    aligned = [g for g in divisors
               if (g * head_size) % 128 == 0 and g * head_size <= max_group_lanes]
    if aligned:
        return max(aligned)
    small = [g for g in divisors if g * head_size <= 128]
    return max(small) if small else 1


def _vmem_estimate_bytes(bt, group_size, seq, hidden, head_size,
                         x_it, w_it, out_it, cd_it):
    ghd = group_size * head_size
    tiles = 2 * bt * seq * hidden * (x_it + out_it)                    # x/out (double-buffered)
    weights = 2 * (hidden * 3 * ghd + ghd * hidden) * w_it \
        + 2 * (3 * ghd + hidden) * 4                                   # wqkv/wo/bqkv/bo buffers
    scratch = bt * seq * hidden * (4 + cd_it)                          # acc + x_cast
    temps = (bt * seq * 3 * ghd * 4                                    # qkv
             + 3 * bt * group_size * seq * seq * 4                     # scores / p / exp
             + bt * group_size * seq * head_size * 4                   # ctx
             + bt * seq * ghd * 4)                                     # ctx2
    return tiles + weights + scratch + temps


def _pick_batch_tile(batch, group_size, seq, hidden, head_size,
                     x_dtype, w_dtype, out_dtype, compute_dtype,
                     budget_bytes=20 * 1024 * 1024):
    x_it = jnp.dtype(x_dtype).itemsize
    w_it = jnp.dtype(w_dtype).itemsize
    o_it = jnp.dtype(out_dtype).itemsize
    c_it = jnp.dtype(compute_dtype).itemsize
    best = 1
    for bt in range(1, batch + 1):
        if batch % bt:
            continue
        # Keep >= 2 steps on the parallel batch axis (v7x has 2 TensorCores).
        if batch > 1 and batch // bt < 2:
            continue
        if _vmem_estimate_bytes(bt, group_size, seq, hidden, head_size,
                                x_it, w_it, o_it, c_it) <= budget_bytes:
            best = bt
    return best


# --------------------------------------------------------------------------- #
# Wrapper                                                                     #
# --------------------------------------------------------------------------- #
def multi_head_attention(x, packed, *, num_heads, head_size,
                         compute_dtype=jnp.bfloat16, batch_tile=None):
    B, S, D = x.shape
    assert num_heads * head_size == D, "num_heads * head_size must equal hidden"

    wqkv, bqkv, wo, bo = packed["wqkv"], packed["bqkv"], packed["wo"], packed["bo"]
    num_groups, _, ghd3 = wqkv.shape
    ghd = ghd3 // 3
    G = ghd // head_size
    assert num_groups * G == num_heads, "packed weights inconsistent with heads"

    Bt = batch_tile if batch_tile is not None else _pick_batch_tile(
        B, G, S, D, head_size, x.dtype, wqkv.dtype, x.dtype, compute_dtype)
    assert B % Bt == 0

    kernel = functools.partial(mha_kernel, head_size=head_size,
                               compute_dtype=compute_dtype)

    # Hoisted-cast scratch only needed when x dtype differs from compute dtype.
    hoist = jnp.dtype(x.dtype) != jnp.dtype(compute_dtype)
    scratch_shapes = [pltpu.VMEM((Bt * S, D), jnp.float32)]
    if hoist:
        scratch_shapes.append(pltpu.VMEM((Bt * S, D), compute_dtype))

    # Deeper weight pipelining only pays off with several head groups per batch tile.
    w_pipe = {"pipeline_mode": pl.Buffered(3)} if num_groups >= 3 else {}

    w_itemsize = jnp.dtype(wqkv.dtype).itemsize
    x_itemsize = jnp.dtype(x.dtype).itemsize
    flops = (2 * B * S * D * 3 * D                       # fused qkv projections
             + 4 * B * num_heads * S * S * head_size     # scores + ctx
             + 2 * B * S * D * D)                        # output projection
    transcendentals = B * num_heads * S * S
    bytes_accessed = (2 * B * S * D * x_itemsize         # x in + out
                      + (B // Bt) * ((wqkv.size + wo.size) * w_itemsize
                                     + (bqkv.size + bo.size) * 4))

    return pl.pallas_call(
        kernel,
        out_shape=jax.ShapeDtypeStruct((B, S, D), x.dtype),
        grid_spec=pltpu.PrefetchScalarGridSpec(
            num_scalar_prefetch=0,
            grid=(B // Bt, num_groups),
            in_specs=[
                pl.BlockSpec((Bt, S, D), lambda b, g: (b, 0, 0)),           # x
                pl.BlockSpec((1, D, ghd3), lambda b, g: (g, 0, 0), **w_pipe),  # wqkv
                pl.BlockSpec((1, 1, ghd3), lambda b, g: (g, 0, 0)),         # bqkv
                pl.BlockSpec((1, ghd, D), lambda b, g: (g, 0, 0), **w_pipe),   # wo
                pl.BlockSpec((1, D), lambda b, g: (0, 0)),                  # bo
            ],
            out_specs=pl.BlockSpec((Bt, S, D), lambda b, g: (b, 0, 0)),
            scratch_shapes=scratch_shapes,
        ),
        compiler_params=pltpu.CompilerParams(
            dimension_semantics=("parallel", "arbitrary"),
            vmem_limit_bytes=32 * 1024 * 1024,   # <= half of v7x's 64 MiB VMEM
        ),
        cost_estimate=pl.CostEstimate(flops=flops,
                                      transcendentals=transcendentals,
                                      bytes_accessed=bytes_accessed),
    )(x, wqkv, bqkv, wo, bo)
    # TODO(synk): for S >> ViT scale, add a KV-tile (online-softmax) grid axis;
    # the (Bt*G, S, S) scores temporary is the first thing to blow VMEM.


# --------------------------------------------------------------------------- #
# Reference, params, packing                                                  #
# --------------------------------------------------------------------------- #
def reference(x, params, *, num_heads, head_size):
    """Pure-JAX reference matching the PyTorch forward (eval mode)."""
    outs = []
    for h in range(num_heads):
        q = x @ params["wq"][h] + params["bq"][h]
        k = x @ params["wk"][h] + params["bk"][h]
        v = x @ params["wv"][h] + params["bv"][h]
        s = (q @ jnp.swapaxes(k, -1, -2)) / math.sqrt(head_size)
        p = jax.nn.softmax(s, axis=-1)
        outs.append(p @ v)
    concat = jnp.concatenate(outs, axis=-1)
    return concat @ params["wo"] + params["bo"]


def init_params(key, num_heads, hidden_size, head_size, dtype=jnp.float32):
    all_head = num_heads * head_size
    keys = jax.random.split(key, 8)

    # Weights stored pre-transposed: (in, out) so the math is x @ W.
    def lin(k, fan_in, shape):
        bound = 1.0 / math.sqrt(fan_in)
        return jax.random.uniform(k, shape, dtype, minval=-bound, maxval=bound)

    return dict(
        wq=lin(keys[0], hidden_size, (num_heads, hidden_size, head_size)),
        bq=lin(keys[1], hidden_size, (num_heads, 1, head_size)),
        wk=lin(keys[2], hidden_size, (num_heads, hidden_size, head_size)),
        bk=lin(keys[3], hidden_size, (num_heads, 1, head_size)),
        wv=lin(keys[4], hidden_size, (num_heads, hidden_size, head_size)),
        bv=lin(keys[5], hidden_size, (num_heads, 1, head_size)),
        wo=lin(keys[6], all_head, (all_head, hidden_size)),
        bo=lin(keys[7], all_head, (1, hidden_size)),
    )


def pack_params(params, num_heads, head_size, hidden_size, group_size,
                weight_dtype=jnp.bfloat16):
    """Pack per-head Q/K/V weights into lane-aligned grouped layout.

    wqkv : (H//G, D, 3*G*Hd)  -- [Q_group | K_group | V_group], heads contiguous
    bqkv : (H//G, 1, 3*G*Hd)  f32
    wo   : (H//G, G*Hd, D)    rows head-major within the group
    bo   : (1, D)             f32
    Matmul weights are cast once to `weight_dtype` (bf16 by default) so the
    kernel never casts them and HBM weight traffic is halved.
    """
    H, Hd, D, G = num_heads, head_size, hidden_size, group_size
    assert H % G == 0
    ng = H // G

    def group_w(w):   # (H, D, Hd) -> (ng, D, G*Hd), heads contiguous in lanes
        return w.reshape(ng, G, D, Hd).transpose(0, 2, 1, 3).reshape(ng, D, G * Hd)

    def group_b(b):   # (H, 1, Hd) -> (ng, 1, G*Hd)
        return b.reshape(ng, G, 1, Hd).transpose(0, 2, 1, 3).reshape(ng, 1, G * Hd)

    wqkv = jnp.concatenate([group_w(params["wq"]), group_w(params["wk"]),
                            group_w(params["wv"])], axis=-1).astype(weight_dtype)
    bqkv = jnp.concatenate([group_b(params["bq"]), group_b(params["bk"]),
                            group_b(params["bv"])], axis=-1).astype(jnp.float32)
    wo = params["wo"].reshape(ng, G * Hd, D).astype(weight_dtype)
    bo = params["bo"].astype(jnp.float32)
    return dict(wqkv=wqkv, bqkv=bqkv, wo=wo, bo=bo)


# --------------------------------------------------------------------------- #
# Test                                                                        #
# --------------------------------------------------------------------------- #
if __name__ == "__main__":
    B, S, D = 2, 8, 32
    num_heads = 4
    head_size = D // num_heads

    key = jax.random.PRNGKey(0)
    kx, kp = jax.random.split(key)
    x = jax.random.normal(kx, (B, S, D), jnp.float32)
    params = init_params(kp, num_heads, D, head_size)

    G = pick_group_size(num_heads, head_size)
    ref = reference(x, params, num_heads=num_heads, head_size=head_size)

    # f32 path: exact softmax division, f32 MXU inputs.
    packed_f32 = pack_params(params, num_heads, head_size, D, G,
                             weight_dtype=jnp.float32)
    out_f32 = multi_head_attention(x, packed_f32, num_heads=num_heads,
                                   head_size=head_size,
                                   compute_dtype=jnp.float32)
    out_f32 = jax.block_until_ready(out_f32)
    assert out_f32.shape == (B, S, D)
    err32 = float(jnp.max(jnp.abs(out_f32 - ref)))
    assert err32 < 5e-3, f"f32 max err {err32}"

    # bf16 path (default perf path): bf16 weights in HBM, bf16 MXU + exp.
    packed_bf16 = pack_params(params, num_heads, head_size, D, G,
                              weight_dtype=jnp.bfloat16)
    out_bf16 = multi_head_attention(x, packed_bf16, num_heads=num_heads,
                                    head_size=head_size,
                                    compute_dtype=jnp.bfloat16)
    out_bf16 = jax.block_until_ready(out_bf16)
    err16 = float(jnp.max(jnp.abs(out_bf16 - ref)))
    assert err16 < 5e-2, f"bf16 max err {err16}"

    print("KERNEL_OK")
</pallas_src>

<mosaic_0001>
module attributes {stable_mosaic.version = 11 : i64} {
  func.func @mha_kernel(%arg0: i32, %arg1: i32, %arg2: memref<1x8x32xf32, #tpu.memory_space<vmem>>, %arg3: memref<1x32x96xf32, #tpu.memory_space<vmem>>, %arg4: memref<1x1x96xf32, #tpu.memory_space<vmem>>, %arg5: memref<1x32x32xf32, #tpu.memory_space<vmem>>, %arg6: memref<1x32xf32, #tpu.memory_space<vmem>>, %arg7: memref<1x8x32xf32, #tpu.memory_space<vmem>>, %arg8: memref<8x32xf32, #tpu.memory_space<vmem>>) attributes {dimension_semantics = [#tpu.dimension_semantics<parallel>, #tpu.dimension_semantics<arbitrary>], iteration_bounds = array<i64: 2, 1>, scalar_prefetch = 0 : i64, scratch_operands = 1 : i64, tpu.core_type = #tpu.core_type<tc>, window_params = [{transform_indices = @transform_0, window_bounds = array<i64: 1, 8, 32>}, {transform_indices = @transform_1, window_bounds = array<i64: 1, 32, 96>}, {transform_indices = @transform_2, window_bounds = array<i64: 1, 1, 96>}, {transform_indices = @transform_3, window_bounds = array<i64: 1, 32, 32>}, {pipeline_mode = #tpu.pipeline_mode<synchronous>, transform_indices = @transform_4, window_bounds = array<i64: 1, 32>}, {transform_indices = @transform_5, window_bounds = array<i64: 1, 8, 32>}]} {
    %c0_i32 = arith.constant 0 : i32
    %0 = arith.cmpi eq, %arg1, %c0_i32 : i32
    %1 = arith.extui %0 : i1 to i32
    %c0_i32_0 = arith.constant 0 : i32
    %2 = arith.cmpi ne, %1, %c0_i32_0 : i32
    scf.if %2 {
      %cst_24 = arith.constant 0.000000e+00 : f32
      %49 = vector.broadcast %cst_24 : f32 to vector<8x32xf32>
      %c0_25 = arith.constant 0 : index
      %c0_26 = arith.constant 0 : index
      %50 = vector.load %arg8[%c0_25, %c0_26] : memref<8x32xf32, #tpu.memory_space<vmem>>, vector<8x32xf32>
      tpu.vector_store %arg8[%c0_25, %c0_26], %49 {strides = array<i32>} : memref<8x32xf32, #tpu.memory_space<vmem>>, vector<8x32xf32>,
    } else {
    }
    %c0 = arith.constant 0 : index
    %c0_1 = arith.constant 0 : index
    %c0_2 = arith.constant 0 : index
    %3 = vector.load %arg2[%c0, %c0_1, %c0_2] : memref<1x8x32xf32, #tpu.memory_space<vmem>>, vector<1x8x32xf32>
    %4 = vector.shape_cast %3 : vector<1x8x32xf32> to vector<8x32xf32>
    %c0_3 = arith.constant 0 : index
    %c0_4 = arith.constant 0 : index
    %c0_5 = arith.constant 0 : index
    %5 = vector.load %arg3[%c0_3, %c0_4, %c0_5] : memref<1x32x96xf32, #tpu.memory_space<vmem>>, vector<1x32x96xf32>
    %6 = vector.shape_cast %5 : vector<1x32x96xf32> to vector<32x96xf32>
    %cst = arith.constant dense<0.000000e+00> : vector<8x96xf32>
    %7 = tpu.matmul %4, %6, %cst {dimension_numbers = #tpu.dot_dimension_numbers<[1], [0], [0], [1], [0, 0, 1, 1], [], []>} : vector<8x32xf32>, vector<32x96xf32>, vector<8x96xf32> -> vector<8x96xf32>
    %c0_6 = arith.constant 0 : index
    %c0_7 = arith.constant 0 : index
    %c0_8 = arith.constant 0 : index
    %8 = vector.load %arg4[%c0_6, %c0_7, %c0_8] : memref<1x1x96xf32, #tpu.memory_space<vmem>>, vector<1x1x96xf32>
    %9 = vector.shape_cast %8 : vector<1x1x96xf32> to vector<1x96xf32>
    %10 = vector.broadcast %9 : vector<1x96xf32> to vector<8x96xf32>
    %11 = arith.addf %7, %10 : vector<8x96xf32>
    %12 = vector.extract_strided_slice %11 {offsets = [0, 0], sizes = [8, 32], strides = [1, 1]} : vector<8x96xf32> to vector<8x32xf32>
    %cst_9 = arith.constant 0.353553385 : f32
    %13 = vector.broadcast %cst_9 : f32 to vector<8x32xf32>
    %14 = arith.mulf %12, %13 : vector<8x32xf32>
    %15 = vector.shape_cast %14 : vector<8x32xf32> to vector<1x8x4x8xf32>
    %16 = tpu.transpose %15, [0, 2, 1, 3] : vector<1x8x4x8xf32> -> vector<1x4x8x8xf32>
    %17 = vector.shape_cast %16 : vector<1x4x8x8xf32> to vector<4x8x8xf32>
    %18 = vector.extract_strided_slice %11 {offsets = [0, 32], sizes = [8, 32], strides = [1, 1]} : vector<8x96xf32> to vector<8x32xf32>
    %19 = vector.shape_cast %18 : vector<8x32xf32> to vector<1x8x4x8xf32>
    %20 = tpu.transpose %19, [0, 2, 1, 3] : vector<1x8x4x8xf32> -> vector<1x4x8x8xf32>
    %21 = vector.shape_cast %20 : vector<1x4x8x8xf32> to vector<4x8x8xf32>
    %22 = vector.extract_strided_slice %11 {offsets = [0, 64], sizes = [8, 32], strides = [1, 1]} : vector<8x96xf32> to vector<8x32xf32>
    %23 = vector.shape_cast %22 : vector<8x32xf32> to vector<1x8x4x8xf32>
    %24 = tpu.transpose %23, [0, 2, 1, 3] : vector<1x8x4x8xf32> -> vector<1x4x8x8xf32>
    %25 = vector.shape_cast %24 : vector<1x4x8x8xf32> to vector<4x8x8xf32>
    %cst_10 = arith.constant dense<0.000000e+00> : vector<4x8x8xf32>
    %26 = tpu.matmul %17, %21, %cst_10 {dimension_numbers = #tpu.dot_dimension_numbers<[2], [2], [1], [1], [0, 0, 0, 1, 1, 1], [0], [0]>} : vector<4x8x8xf32>, vector<4x8x8xf32>, vector<4x8x8xf32> -> vector<4x8x8xf32>
    %cst_11 = arith.constant dense<0xFF800000> : vector<4x8xf32>
    %27 = vector.multi_reduction <maximumf>, %26, %cst_11 [2] : vector<4x8x8xf32> to vector<4x8xf32>
    %28 = vector.shape_cast %27 : vector<4x8xf32> to vector<4x8x1xf32>
    %29 = vector.broadcast %28 : vector<4x8x1xf32> to vector<4x8x8xf32>
    %30 = arith.subf %26, %29 : vector<4x8x8xf32>
    %31 = math.exp %30 : vector<4x8x8xf32>
    %cst_12 = arith.constant dense<0.000000e+00> : vector<4x8xf32>
    %32 = vector.multi_reduction <add>, %31, %cst_12 [2] : vector<4x8x8xf32> to vector<4x8xf32>
    %33 = vector.shape_cast %32 : vector<4x8xf32> to vector<4x8x1xf32>
    %cst_13 = arith.constant dense<0.000000e+00> : vector<4x8x8xf32>
    %34 = tpu.matmul %31, %25, %cst_13 {dimension_numbers = #tpu.dot_dimension_numbers<[2], [1], [1], [2], [0, 0, 0, 1, 1, 2], [0], [0]>} : vector<4x8x8xf32>, vector<4x8x8xf32>, vector<4x8x8xf32> -> vector<4x8x8xf32>
    %35 = vector.broadcast %33 : vector<4x8x1xf32> to vector<4x8x8xf32>
    %36 = arith.divf %34, %35 : vector<4x8x8xf32>
    %37 = vector.shape_cast %36 : vector<4x8x8xf32> to vector<1x4x8x8xf32>
    %38 = tpu.transpose %37, [0, 2, 1, 3] : vector<1x4x8x8xf32> -> vector<1x8x4x8xf32>
    %39 = vector.shape_cast %38 : vector<1x8x4x8xf32> to vector<8x32xf32>
    %c0_14 = arith.constant 0 : index
    %c0_15 = arith.constant 0 : index
    %40 = vector.load %arg8[%c0_14, %c0_15] : memref<8x32xf32, #tpu.memory_space<vmem>>, vector<8x32xf32>
    %c0_16 = arith.constant 0 : index
    %c0_17 = arith.constant 0 : index
    %c0_18 = arith.constant 0 : index
    %41 = vector.load %arg5[%c0_16, %c0_17, %c0_18] : memref<1x32x32xf32, #tpu.memory_space<vmem>>, vector<1x32x32xf32>
    %42 = vector.shape_cast %41 : vector<1x32x32xf32> to vector<32x32xf32>
    %cst_19 = arith.constant dense<0.000000e+00> : vector<8x32xf32>
    %43 = tpu.matmul %39, %42, %cst_19 {dimension_numbers = #tpu.dot_dimension_numbers<[1], [0], [0], [1], [0, 0, 1, 1], [], []>} : vector<8x32xf32>, vector<32x32xf32>, vector<8x32xf32> -> vector<8x32xf32>
    %44 = arith.addf %40, %43 : vector<8x32xf32>
    %c0_20 = arith.constant 0 : index
    %c0_21 = arith.constant 0 : index
    %45 = vector.load %arg8[%c0_20, %c0_21] : memref<8x32xf32, #tpu.memory_space<vmem>>, vector<8x32xf32>
    tpu.vector_store %arg8[%c0_20, %c0_21], %44 {strides = array<i32>} : memref<8x32xf32, #tpu.memory_space<vmem>>, vector<8x32xf32>,
    %c0_i32_22 = arith.constant 0 : i32
    %46 = arith.cmpi eq, %arg1, %c0_i32_22 : i32
    %47 = arith.extui %46 : i1 to i32
    %c0_i32_23 = arith.constant 0 : i32
    %48 = arith.cmpi ne, %47, %c0_i32_23 : i32
    scf.if %48 {
      %c0_24 = arith.constant 0 : index
      %c0_25 = arith.constant 0 : index
      %49 = vector.load %arg8[%c0_24, %c0_25] : memref<8x32xf32, #tpu.memory_space<vmem>>, vector<8x32xf32>
      %c0_26 = arith.constant 0 : index
      %c0_27 = arith.constant 0 : index
      %50 = vector.load %arg6[%c0_26, %c0_27] : memref<1x32xf32, #tpu.memory_space<vmem>>, vector<1x32xf32>
      %51 = vector.broadcast %50 : vector<1x32xf32> to vector<8x32xf32>
      %52 = arith.addf %49, %51 : vector<8x32xf32>
      %53 = vector.shape_cast %52 : vector<8x32xf32> to vector<1x8x32xf32>
      %c0_28 = arith.constant 0 : index
      %c0_29 = arith.constant 0 : index
      %c0_30 = arith.constant 0 : index
      %54 = vector.load %arg7[%c0_28, %c0_29, %c0_30] : memref<1x8x32xf32, #tpu.memory_space<vmem>>, vector<1x8x32xf32>
      tpu.vector_store %arg7[%c0_28, %c0_29, %c0_30], %53 {strides = array<i32>} : memref<1x8x32xf32, #tpu.memory_space<vmem>>, vector<1x8x32xf32>,
    } else {
    }
    return
  }
  func.func @transform_0(%arg0: i32, %arg1: i32) -> (i32, i32, i32) {
    %c0_i32 = arith.constant 0 : i32
    %c0_i32_0 = arith.constant 0 : i32
    %c0_i32_1 = arith.constant 0 : i32
    return %arg0, %c0_i32, %c0_i32_0 : i32, i32, i32
  }
  func.func @transform_1(%arg0: i32, %arg1: i32) -> (i32, i32, i32) {
    %c0_i32 = arith.constant 0 : i32
    %c0_i32_0 = arith.constant 0 : i32
    %c0_i32_1 = arith.constant 0 : i32
    return %arg1, %c0_i32, %c0_i32_0 : i32, i32, i32
  }
  func.func @transform_2(%arg0: i32, %arg1: i32) -> (i32, i32, i32) {
    %c0_i32 = arith.constant 0 : i32
    %c0_i32_0 = arith.constant 0 : i32
    %c0_i32_1 = arith.constant 0 : i32
    return %arg1, %c0_i32, %c0_i32_0 : i32, i32, i32
  }
  func.func @transform_3(%arg0: i32, %arg1: i32) -> (i32, i32, i32) {
    %c0_i32 = arith.constant 0 : i32
    %c0_i32_0 = arith.constant 0 : i32
    %c0_i32_1 = arith.constant 0 : i32
    return %arg1, %c0_i32, %c0_i32_0 : i32, i32, i32
  }
  func.func @transform_4(%arg0: i32, %arg1: i32) -> (i32, i32) {
    %c0_i32 = arith.constant 0 : i32
    %c0_i32_0 = arith.constant 0 : i32
    %c0_i32_1 = arith.constant 0 : i32
    return %c0_i32, %c0_i32_0 : i32, i32
  }
  func.func @transform_5(%arg0: i32, %arg1: i32) -> (i32, i32, i32) {
    %c0_i32 = arith.constant 0 : i32
    %c0_i32_0 = arith.constant 0 : i32
    %c0_i32_1 = arith.constant 0 : i32
    return %arg0, %c0_i32, %c0_i32_0 : i32, i32, i32
  }
}

</mosaic_0001>

<llo_original>
// kernel: tpu_custom_call.1
$region0: #{tpu_custom_call.1}
  #allocation0 [shape = 'u32[]', space=smem, size = 0x4, offset = 0x4, fixed_abs, tag = 'smem constant byte address 0x4 - core index']
  #allocation1 [shape = 'u32[144,128]{1,0:T(1,128)}', space=vmem, size = 0x12000, scoped, tag = 'internal scratch']
  #allocation2 [shape = 'f32[8,32]{1,0:T(8,128)}', space=vmem, size = 0x1000, scoped, tag = 'scratch operand']
  %s0 = inlined_call_operand.hbm [shape: f32[2,8,32], index: 0, kind: input, shape index: {}]
  %s1 = inlined_call_operand.hbm [shape: f32[1,32,96], index: 1, kind: input, shape index: {}]
  %s2 = inlined_call_operand.vmem [shape: f32[1,1,96], index: 2, kind: input, shape index: {}]
  %s3 = inlined_call_operand.hbm [shape: f32[1,32,32], index: 3, kind: input, shape index: {}]
  %s4 = inlined_call_operand.vmem [shape: f32[1,32], index: 4, kind: input, shape index: {}]
  %s5 = inlined_call_operand.hbm [shape: f32[2,8,32], index: 5, kind: output, shape index: {}]
  %s6 = sld [smem:[#allocation0]]
  $region73: #{tpu_custom_call.1} parent=0
    _
  %s8 = ssub.s32 1, %s6
  %s9 = scalar_select 0, %s8, %s6
  $region1: #{tpu_custom_call.1} parent=0
    #allocation3 [shape = 'u8[8192]{0}', space=vmem, size = 0x2000, scoped, tag = 'input window, operand 0']
    #allocation4 [shape = 's32[2]{0}', space=sflag, size = 0x8, scoped, tag = 'scoped memory for tpu_custom_call.1']
    #allocation5 [shape = 's32[2]{0}', space=sflag, size = 0x8, scoped, tag = 'scoped memory for tpu_custom_call.1']
    #allocation6 [shape = 'u8[16384]{0}', space=vmem, size = 0x4000, scoped, tag = 'input window, operand 1, single buffered']
    #allocation7 [shape = 's32[1]{0}', space=sflag, size = 0x4, scoped, tag = 'scoped memory for tpu_custom_call.1']
    #allocation8 [shape = 'u8[16384]{0}', space=vmem, size = 0x4000, scoped, tag = 'input window, operand 3, single buffered']
    #allocation9 [shape = 'u8[8192]{0}', space=vmem, size = 0x2000, scoped, tag = 'output window, operand 0']
    %10 = vsyncpa [#allocation4], 0
    %s11 = scalar_lea.sflag [#allocation4], 1
    %12 = vsyncpa %s11, 0
    %13 = vsyncpa [#allocation7], 0
    %14 = vsyncpa [#allocation5], 0
    %s15 = scalar_lea.sflag [#allocation5], 1
    %16 = vsyncpa %s15, 0
    loop: start=0, step=1, limit=4
    $region2: #{tpu_custom_call.1} parent=1 // loop_pre_header
      _
    $region3: #{tpu_custom_call.1} parent=1 // loop_header
      %s18 = sphi 0, %s22
      %p19 = scmp.ge.s32.totalorder %s18, 4
      %s25 = sphi 0, %s37
      %s26 = sphi 0, %s33
      %s27 = sphi 0, %s25
      %s28 = sphi 0, %s26
      %s29 = sphi 0, %s27
      %s30 = sphi 0, %s28
      %s40 = sphi 0, %s42
      %s43 = sphi 0, %s40
      %s44 = sphi 0, %s43
      %s60 = sphi 0, %s44
      %s66 = sphi 0, %s68
      %s69 = sphi 0, %s66
      %s70 = sphi 0, %s69
      %s86 = sphi 0, %s70
      %s92 = sphi 0, %s94
      %s95 = sphi 0, %s92
      %s96 = sphi 0, %s95
      %s112 = sphi 0, %s96
      %s118 = sphi 0, %s120
      %s121 = sphi 0, %s118
      %s122 = sphi 0, %s121
      %s138 = sphi 0, %s122
      %s142 = sphi 0, %s142
      %s144 = sphi 0, %s142
      %s145 = sphi 0, %s144
      %s159 = sphi 0, %s145
      %s165 = sphi 0, %s167
      %s168 = sphi 0, %s165
      %s169 = sphi 0, %s168
      %s185 = sphi 0, %s169
    $region4: #{tpu_custom_call.1} parent=1 // loop_header_branch
      %21 = sbr.rel (%p19) target = $region8
    $region5: #{tpu_custom_call.1} parent=1 // loop_body
      %s23 = ssub.s32 %s18, 1
      %s24 = ssub.s32 %s18, 2
      %s31 = sadd.s32 1, %s26
      %p32 = scmp.ge.s32.totalorder %s31, 1
      %s33 = scalar_select %p32, 0, %s31
      %s34 = sadd.s32 1, %s25
      %s35 = scalar_select %p32, %s34, %s25
      %p36 = scmp.ge.s32.totalorder %s35, 2
      %s37 = scalar_select %p36, 0, %s35
      %s38 = ssub.s32 %s25, %s37
      %p39 = scmp.eq.s32.totalorder %s38, 0
      %s41 = sadd.s32 %s40, 1
      %s42 = scalar_select %p39, %s40, %s41
      %p45 = pneg %p39
      %p46 = scmp.eq.s32.totalorder %s18, 1
      %p47 = por %p45, %p46
      %p48 = scmp.ne.s32.totalorder %s40, %s43
      %p49 = scmp.eq.s32.totalorder %s18, 0
      %p50 = por %p48, %p49
      %p51 = scmp.ne.s32.totalorder %s40, %s43
      %p52 = scmp.eq.s32.totalorder %s23, 1
      %p53 = por %p51, %p52
      %p54 = scmp.ne.s32.totalorder %s43, %s44
      %p55 = scmp.eq.s32.totalorder %s23, 0
      %p56 = por %p54, %p55
      %p57 = scmp.ne.s32.totalorder %s43, %s44
      %p58 = scmp.eq.s32.totalorder %s24, 1
      %p59 = por %p57, %p58
      %p61 = scmp.ne.s32.totalorder %s44, %s60
      %p62 = scmp.eq.s32.totalorder %s24, 0
      %p63 = por %p61, %p62
      %s64 = ssub.s32 %s26, %s33
      %p65 = scmp.eq.s32.totalorder %s64, 0
      %s67 = sadd.s32 %s66, 1
      %s68 = scalar_select %p65, %s66, %s67
      %p71 = pneg %p65
      %p72 = scmp.eq.s32.totalorder %s18, 1
      %p73 = por %p71, %p72
      %p74 = scmp.ne.s32.totalorder %s66, %s69
      %p75 = scmp.eq.s32.totalorder %s18, 0
      %p76 = por %p74, %p75
      %p77 = scmp.ne.s32.totalorder %s66, %s69
      %p78 = scmp.eq.s32.totalorder %s23, 1
      %p79 = por %p77, %p78
      %p80 = scmp.ne.s32.totalorder %s69, %s70
      %p81 = scmp.eq.s32.totalorder %s23, 0
      %p82 = por %p80, %p81
      %p83 = scmp.ne.s32.totalorder %s69, %s70
      %p84 = scmp.eq.s32.totalorder %s24, 1
      %p85 = por %p83, %p84
      %p87 = scmp.ne.s32.totalorder %s70, %s86
      %p88 = scmp.eq.s32.totalorder %s24, 0
      %p89 = por %p87, %p88
      %s90 = ssub.s32 %s26, %s33
      %p91 = scmp.eq.s32.totalorder %s90, 0
      %s93 = sadd.s32 %s92, 1
      %s94 = scalar_select %p91, %s92, %s93
      %p97 = pneg %p91
      %p98 = scmp.eq.s32.totalorder %s18, 1
      %p99 = por %p97, %p98
      %p100 = scmp.ne.s32.totalorder %s92, %s95
      %p101 = scmp.eq.s32.totalorder %s18, 0
      %p102 = por %p100, %p101
      %p103 = scmp.ne.s32.totalorder %s92, %s95
      %p104 = scmp.eq.s32.totalorder %s23, 1
      %p105 = por %p103, %p104
      %p106 = scmp.ne.s32.totalorder %s95, %s96
      %p107 = scmp.eq.s32.totalorder %s23, 0
      %p108 = por %p106, %p107
      %p109 = scmp.ne.s32.totalorder %s95, %s96
      %p110 = scmp.eq.s32.totalorder %s24, 1
      %p111 = por %p109, %p110
      %p113 = scmp.ne.s32.totalorder %s96, %s112
      %p114 = scmp.eq.s32.totalorder %s24, 0
      %p115 = por %p113, %p114
      %s116 = ssub.s32 %s26, %s33
      %p117 = scmp.eq.s32.totalorder %s116, 0
      %s119 = sadd.s32 %s118, 1
      %s120 = scalar_select %p117, %s118, %s119
      %p123 = pneg %p117
      %p124 = scmp.eq.s32.totalorder %s18, 1
      %p125 = por %p123, %p124
      %p126 = scmp.ne.s32.totalorder %s118, %s121
      %p127 = scmp.eq.s32.totalorder %s18, 0
      %p128 = por %p126, %p127
      %p129 = scmp.ne.s32.totalorder %s118, %s121
      %p130 = scmp.eq.s32.totalorder %s23, 1
      %p131 = por %p129, %p130
      %p132 = scmp.ne.s32.totalorder %s121, %s122
      %p133 = scmp.eq.s32.totalorder %s23, 0
      %p134 = por %p132, %p133
      %p135 = scmp.ne.s32.totalorder %s121, %s122
      %p136 = scmp.eq.s32.totalorder %s24, 1
      %p137 = por %p135, %p136
      %p139 = scmp.ne.s32.totalorder %s122, %s138
      %p140 = scmp.eq.s32.totalorder %s24, 0
      %p141 = por %p139, %p140
      %s143 = sadd.s32 %s142, 1
      %p146 = scmp.eq.s32.totalorder %s18, 1
      %p147 = scmp.ne.s32.totalorder %s142, %s144
      %p148 = scmp.eq.s32.totalorder %s18, 0
      %p149 = por %p147, %p148
      %p150 = scmp.ne.s32.totalorder %s142, %s144
      %p151 = scmp.eq.s32.totalorder %s23, 1
      %p152 = por %p150, %p151
      %p153 = scmp.ne.s32.totalorder %s144, %s145
      %p154 = scmp.eq.s32.totalorder %s23, 0
      %p155 = por %p153, %p154
      %p156 = scmp.ne.s32.totalorder %s144, %s145
      %p157 = scmp.eq.s32.totalorder %s24, 1
      %p158 = por %p156, %p157
      %p160 = scmp.ne.s32.totalorder %s145, %s159
      %p161 = scmp.eq.s32.totalorder %s24, 0
      %p162 = por %p160, %p161
      %s163 = ssub.s32 %s25, %s37
      %p164 = scmp.eq.s32.totalorder %s163, 0
      %s166 = sadd.s32 %s165, 1
      %s167 = scalar_select %p164, %s165, %s166
      %p170 = pneg %p164
      %p171 = scmp.eq.s32.totalorder %s18, 1
      %p172 = por %p170, %p171
      %p173 = scmp.ne.s32.totalorder %s165, %s168
      %p174 = scmp.eq.s32.totalorder %s18, 0
      %p175 = por %p173, %p174
      %p176 = scmp.ne.s32.totalorder %s165, %s168
      %p177 = scmp.eq.s32.totalorder %s23, 1
      %p178 = por %p176, %p177
      %p179 = scmp.ne.s32.totalorder %s168, %s169
      %p180 = scmp.eq.s32.totalorder %s23, 0
      %p181 = por %p179, %p180
      %p182 = scmp.ne.s32.totalorder %s168, %s169
      %p183 = scmp.eq.s32.totalorder %s24, 1
      %p184 = por %p182, %p183
      %p186 = scmp.ne.s32.totalorder %s169, %s185
      %p187 = scmp.eq.s32.totalorder %s24, 0
      %p188 = por %p186, %p187
      %p189 = scmp.le.s32.totalorder 1, %s18
      %p190 = scmp.lt.s32.totalorder %s18, 3
      %p191 = pnand %p189, %p190
      %p192 = pneg %p191
      // Predicated region
      $region9: #{tpu_custom_call.1} parent=5 // pred_check
        _
      $region10: #{tpu_custom_call.1} parent=5 // pred_check_branch
        %194 = sbr.rel (%p191) target = $region12
      $region11: #{tpu_custom_call.1} parent=5 // pred_region
        %s195 = ssub.s32 %s18, 1
        // Predicated region
        $region13: #{tpu_custom_call.1} parent=11 // pred_check
          %p196 = pneg %p82
        $region14: #{tpu_custom_call.1} parent=11 // pred_check_branch
          %198 = sbr.rel (%p196) target = $region16
        $region15: #{tpu_custom_call.1} parent=11 // pred_region
          %s200 = ssub.s32 512, 512
          %201 = vsyncadd [#allocation7], %s200
          %s202 = smul.addr %s28, 4
          %s203 = smul.addr %s202, 128
          %s204 = scalar_lea.hbm %s1, %s203
          %s205 = sshll.u32 [#allocation6], 4
          %s206 = int_to_ptr.vmem [resolvable:$true] %s205
          %211 = dma.hbm_to_vmem [thread:$0]  %s204, 512, %s206, [#allocation7], 128, 128, 8
        $region16: #{tpu_custom_call.1} parent=11 // pred_fallthru
          _
        // Predicated region
        $region17: #{tpu_custom_call.1} parent=11 // pred_check
          %p212 = pneg %p108
        $region18: #{tpu_custom_call.1} parent=11 // pred_check_branch
          %214 = sbr.rel (%p212) target = $region20
        $region19: #{tpu_custom_call.1} parent=11 // pred_region
          %p215 = scmp.lt.s32.totalorder %s28, 0
          %s216 = scalar_select %p215, %s28, 0
          %s217 = scalar_lea.vmem %s2, %s216
        $region20: #{tpu_custom_call.1} parent=11 // pred_fallthru
          _
        // Predicated region
        $region21: #{tpu_custom_call.1} parent=11 // pred_check
          %p218 = pneg %p134
        $region22: #{tpu_custom_call.1} parent=11 // pred_check_branch
          %220 = sbr.rel (%p218) target = $region24
        $region23: #{tpu_custom_call.1} parent=11 // pred_region
          %s222 = ssub.s32 512, 512
          %223 = vsyncadd [#allocation7], %s222
          %s224 = smul.addr %s28, 4
          %s225 = smul.addr %s224, 128
          %s226 = scalar_lea.hbm %s3, %s225
          %s227 = sshll.u32 [#allocation8], 4
          %s228 = int_to_ptr.vmem [resolvable:$true] %s227
          %233 = dma.hbm_to_vmem [thread:$0]  %s226, 512, %s228, [#allocation7], 128, 128, 8
        $region24: #{tpu_custom_call.1} parent=11 // pred_fallthru
          _
        // Predicated region
        $region25: #{tpu_custom_call.1} parent=11 // pred_check
          %p234 = pneg %p155
        $region26: #{tpu_custom_call.1} parent=11 // pred_check_branch
          %236 = sbr.rel (%p234) target = $region28
        $region27: #{tpu_custom_call.1} parent=11 // pred_region
          _
        $region28: #{tpu_custom_call.1} parent=11 // pred_fallthru
          _
      $region12: #{tpu_custom_call.1} parent=5 // pred_fallthru
        _
      %p237 = scmp.lt.s32.totalorder %s18, 2
      // Predicated region
      $region29: #{tpu_custom_call.1} parent=5 // pred_check
        %p238 = pneg %p237
      $region30: #{tpu_custom_call.1} parent=5 // pred_check_branch
        %240 = sbr.rel (%p238) target = $region32
      $region31: #{tpu_custom_call.1} parent=5 // pred_region
        // Predicated region
        $region33: #{tpu_custom_call.1} parent=31 // pred_check
          %p241 = pneg %p50
        $region34: #{tpu_custom_call.1} parent=31 // pred_check_branch
          %243 = sbr.rel (%p241) target = $region36
        $region35: #{tpu_custom_call.1} parent=31 // pred_region
          %s244 = sand.u32 %s40, 1
          %s245 = scalar_lea.sflag [#allocation4], %s244
          %s246 = sand.u32 %s40, 1
          %s247 = smul.addr %s246, 8
          %s248 = scalar_lea.vmem [#allocation3], %s247
          %s250 = ssub.s32 128, 128
          %251 = vsyncadd %s245, %s250
          %s252 = smul.addr %s25, 128
          %s253 = scalar_lea.hbm %s0, %s252
          %s255 = sshll.u32 %s248, 4
          %s256 = int_to_ptr.vmem [resolvable:$true] %s255
          %258 = dma.hbm_to_vmem [thread:$0]  %s253, 128, %s256, %s245
        $region36: #{tpu_custom_call.1} parent=31 // pred_fallthru
          _
      $region32: #{tpu_custom_call.1} parent=5 // pred_fallthru
        _
      %p259 = scmp.le.s32.totalorder 1, %s18
      %p260 = scmp.lt.s32.totalorder %s18, 3
      %p261 = pnand %p259, %p260
      %p262 = pneg %p261
      // Predicated region
      $region37: #{tpu_custom_call.1} parent=5 // pred_check
        _
      $region38: #{tpu_custom_call.1} parent=5 // pred_check_branch
        %264 = sbr.rel (%p261) target = $region40
      $region39: #{tpu_custom_call.1} parent=5 // pred_region
        %s265 = ssub.s32 %s18, 1
        %s266 = sand.u32 %s43, 1
        %s267 = scalar_lea.sflag [#allocation4], %s266
        %s268 = sand.u32 %s43, 1
        %s269 = smul.addr %s268, 8
        %s270 = scalar_lea.vmem [#allocation3], %s269
        // Predicated region
        $region41: #{tpu_custom_call.1} parent=39 // pred_check
          %p271 = pneg %p56
        $region42: #{tpu_custom_call.1} parent=39 // pred_check_branch
          %273 = sbr.rel (%p271) target = $region44
        $region43: #{tpu_custom_call.1} parent=39 // pred_region
          %274 = dma.done %s267, 128
        $region44: #{tpu_custom_call.1} parent=39 // pred_fallthru
          _
        // Predicated region
        $region45: #{tpu_custom_call.1} parent=39 // pred_check
          %p275 = pneg %p82
        $region46: #{tpu_custom_call.1} parent=39 // pred_check_branch
          %277 = sbr.rel (%p275) target = $region48
        $region47: #{tpu_custom_call.1} parent=39 // pred_region
          %278 = dma.done [#allocation7], 512
        $region48: #{tpu_custom_call.1} parent=39 // pred_fallthru
          _
        // Predicated region
        $region49: #{tpu_custom_call.1} parent=39 // pred_check
          %p279 = pneg %p134
        $region50: #{tpu_custom_call.1} parent=39 // pred_check_branch
          %281 = sbr.rel (%p279) target = $region52
        $region51: #{tpu_custom_call.1} parent=39 // pred_region
          %282 = dma.done [#allocation7], 512
        $region52: #{tpu_custom_call.1} parent=39 // pred_fallthru
          _
        %s283 = sand.u32 %s43, 1
        %s284 = scalar_lea.sflag [#allocation4], %s283
        %s285 = sand.u32 %s43, 1
        %s286 = smul.addr %s285, 8
        %s287 = scalar_lea.vmem [#allocation3], %s286
        %p288 = pneg %p56
        %p289 = pneg %p53
        %p290 = pneg %p82
        %p291 = pneg %p79
        %p292 = scmp.lt.s32.totalorder %s28, 0
        %s293 = scalar_select %p292, %s28, 0
        %s294 = scalar_lea.vmem %s2, %s293
        %p295 = pneg %p108
        %p296 = pneg %p105
        %p297 = pneg %p134
        %p298 = pneg %p131
        %p299 = pneg %p155
        %p300 = pneg %p152
        %p301 = pneg %p181
        %p302 = pneg %p178
        %s303 = sand.u32 %s168, 1
        %s304 = scalar_lea.sflag [#allocation5], %s303
        %s305 = sand.u32 %s168, 1
        %s306 = smul.addr %s305, 8
        %s307 = scalar_lea.vmem [#allocation9], %s306
        %p308 = scmp.lt.s32.totalorder %s28, 0
        %s309 = scalar_select %p308, %s28, 0
        %s310 = scalar_lea.vmem %s2, %s309
        %p311 = scmp.eq.s32.totalorder %s28, 0
        // Predicated region
        $region53: #{tpu_custom_call.1} parent=39 // pred_check
          %p312 = pneg %p311
        $region54: #{tpu_custom_call.1} parent=39 // pred_check_branch
          %314 = sbr.rel (%p312) target = $region56
        $region55: #{tpu_custom_call.1} parent=39 // pred_region
          %vm315 = vcmask 261120
          %316 = vst.msk [vmem:[#allocation2] sm:$0xff] %vm315, 0.0
        $region56: #{tpu_custom_call.1} parent=39 // pred_fallthru
          _
        %v317 = vld [vmem:[%s270] sm:$0xff]
        %v318 = vld [vmem:[#allocation6] sm:$0xff]
        %v319 = vld [vmem:[#allocation6 + $0x8] sm:$0xff]
        %v320 = vld [vmem:[#allocation6 + $0x10] sm:$0xff]
        %v321 = vld [vmem:[#allocation6 + $0x18] sm:$0xff]
        %v322 = vld [vmem:[%s310] sm:$0x1]
        %v324 = vlaneseq
        %v325 = vshrl.u32 %v324, 7
        %v326 = vsub.s32 0, %v325
        %v327 = vrot.slane %v322, %v326
        %vm329 = vcmask 261120
        %v331 = vsel %vm329, %v317, 0
        %333 = vmatprep.subr.mxu0 0.0
        %334 = vmatpush1.msra.mxu0 0.0
        %335 = vmatprep.subr.mxu0 0.0
        %336 = vmatpush1.msra.mxu0 0.0
        %337 = vmatprep.subr.mxu0 0.0
        %338 = vmatpush1.msra.mxu0 0.0
        %339 = vmatprep.subr.mxu0 0.0
        %340 = vmatpush1.msra.mxu0 0.0
        %341 = vmatprep.subr.mxu0 0.0
        %342 = vmatpush1.msra.mxu0 0.0
        %343 = vmatprep.subr.mxu0 0.0
        %344 = vmatpush1.msra.mxu0 0.0
        %345 = vmatprep.subr.mxu0 0.0
        %346 = vmatpush1.msra.mxu0 0.0
        %347 = vmatprep.subr.mxu0 0.0
        %348 = vmatpush1.msra.mxu0 0.0
        %349 = vmatprep.subr.mxu0 0.0
        %350 = vmatpush1.msra.mxu0 0.0
        %351 = vmatprep.subr.mxu0 0.0
        %352 = vmatpush1.msra.mxu0 0.0
        %353 = vmatprep.subr.mxu0 0.0
        %354 = vmatpush1.msra.mxu0 0.0
        %355 = vmatprep.subr.mxu0 0.0
        %356 = vmatpush1.msra.mxu0 0.0
        %357 = vmatprep.subr.mxu0 0.0
        %358 = vmatpush1.msra.mxu0 %v321
        %359 = vmatprep.subr.mxu0 0.0
        %360 = vmatpush1.msra.mxu0 %v320
        %361 = vmatprep.subr.mxu0 0.0
        %362 = vmatpush1.msra.mxu0 %v319
        %363 = vmatprep.subr.mxu0 0.0
        %364 = vmatpush1.msra.mxu0 %v318
        %365 = vmatprep.subr.mxu0 0.0
        %366 = vmatpush2.msra.mxu0 0.0
        %367 = vmatprep.subr.mxu0 0.0
        %368 = vmatpush2.msra.mxu0 0.0
        %369 = vmatprep.subr.mxu0 0.0
        %370 = vmatpush2.msra.mxu0 0.0
        %371 = vmatprep.subr.mxu0 0.0
        %372 = vmatpush2.msra.mxu0 0.0
        %373 = vmatprep.subr.mxu0 0.0
        %374 = vmatpush2.msra.mxu0 0.0
        %375 = vmatprep.subr.mxu0 0.0
        %376 = vmatpush2.msra.mxu0 0.0
        %377 = vmatprep.subr.mxu0 0.0
        %378 = vmatpush2.msra.mxu0 0.0
        %379 = vmatprep.subr.mxu0 0.0
        %380 = vmatpush2.msra.mxu0 0.0
        %381 = vmatprep.subr.mxu0 0.0
        %382 = vmatpush2.msra.mxu0 0.0
        %383 = vmatprep.subr.mxu0 0.0
        %384 = vmatpush2.msra.mxu0 0.0
        %385 = vmatprep.subr.mxu0 0.0
        %386 = vmatpush2.msra.mxu0 0.0
        %387 = vmatprep.subr.mxu0 0.0
        %388 = vmatpush2.msra.mxu0 0.0
        %389 = vmatprep.subr.mxu0 0.0
        %390 = vmatpush2.msra.mxu0 0.0
        %391 = vmatprep.subr.mxu0 0.0
        %392 = vmatpush2.msra.mxu0 0.0
        %393 = vmatprep.subr.mxu0 0.0
        %394 = vmatpush2.msra.mxu0 0.0
        %395 = vmatprep.subr.mxu0 0.0
        %396 = vmatpush2.msra.mxu0 0.0
        %397 = vmatprep.mubr.f32.mxu0 0.0
        %398 = vmatmul.mubr.f32.gmra.mxu0 %v331
        %v399 = vpop.f32.mrf.mxu0
        %v400 = vadd.f32 %v327, %v399
        %v401 = vpop.f32.mrf.mxu0
        %402 = vdwg.mxu0
        %v403 = vmul.f32 %v400, 0.35355338
        %405 = vrot.lane.b32.xlu0 %v403, 120
        %v406 = vpop.permute.xlu0 %405
        %408 = vrot.lane.b32.xlu0 %v403, 112
        %v409 = vpop.permute.xlu0 %408
        %411 = vrot.lane.b32.xlu0 %v403, 104
        %v412 = vpop.permute.xlu0 %411
        %v414 = vcombine.low %v403, %v409
        %v415 = vcombine.high %v403, %v409
        %v417 = vunpack.c.l.s4 1983009808
        %v418 = vunpack.c.0.s8 %v417
        %v419 = vlaneseq
        %v420 = vshrl.u32 %v419, 7
        %v421 = vsub.s32 %v418, %v420
        %v422 = vrot.slane %v414, %v421
        %v424 = vunpack.c.l.s4 1983009808
        %v425 = vunpack.c.0.s8 %v424
        %v426 = vlaneseq
        %v427 = vshrl.u32 %v426, 7
        %v428 = vsub.s32 %v425, %v427
        %v429 = vrot.slane %v415, %v428
        %v430 = vcombine.low %v406, %v412
        %v431 = vcombine.high %v406, %v412
        %v433 = vunpack.c.l.s4 1983009808
        %v434 = vunpack.c.0.s8 %v433
        %v435 = vlaneseq
        %v436 = vshrl.u32 %v435, 7
        %v437 = vsub.s32 %v434, %v436
        %v438 = vrot.slane %v430, %v437
        %v440 = vunpack.c.l.s4 1983009808
        %v441 = vunpack.c.0.s8 %v440
        %v442 = vlaneseq
        %v443 = vshrl.u32 %v442, 7
        %v444 = vsub.s32 %v441, %v443
        %v445 = vrot.slane %v431, %v444
        %v446 = vcombine.low %v422, %v438
        %v447 = vcombine.high %v422, %v438
        %v449 = vunpack.c.l.s4 1934713408
        %v450 = vunpack.c.0.s8 %v449
        %v451 = vlaneseq
        %v452 = vshrl.u32 %v451, 7
        %v453 = vsub.s32 %v450, %v452
        %v454 = vrot.slane %v446, %v453
        %v456 = vunpack.c.l.s4 1934713408
        %v457 = vunpack.c.0.s8 %v456
        %v458 = vlaneseq
        %v459 = vshrl.u32 %v458, 7
        %v460 = vsub.s32 %v457, %v459
        %v461 = vrot.slane %v447, %v460
        %v462 = vcombine.low %v429, %v445
        %v463 = vcombine.high %v429, %v445
        %v465 = vunpack.c.l.s4 1934713408
        %v466 = vunpack.c.0.s8 %v465
        %v467 = vlaneseq
        %v468 = vshrl.u32 %v467, 7
        %v469 = vsub.s32 %v466, %v468
        %v470 = vrot.slane %v462, %v469
        %v472 = vunpack.c.l.s4 1934713408
        %v473 = vunpack.c.0.s8 %v472
        %v474 = vlaneseq
        %v475 = vshrl.u32 %v474, 7
        %v476 = vsub.s32 %v473, %v475
        %v477 = vrot.slane %v463, %v476
        %v478 = vcombine.high %v454, 0.0
        %v479 = vcombine.high %v461, 0.0
        %v480 = vcombine.high %v470, 0.0
        %v481 = vcombine.high %v477, 0.0
        %v482 = vcombine.low %v454, %v461
        %v484 = vunpack.c.l.s4 1983009808
        %v485 = vunpack.c.0.s8 %v484
        %v486 = vlaneseq
        %v487 = vshrl.u32 %v486, 7
        %v488 = vsub.s32 %v485, %v487
        %v489 = vrot.slane %v482, %v488
        %v490 = vcombine.low %v478, %v479
        %v492 = vunpack.c.l.s4 1983009808
        %v493 = vunpack.c.0.s8 %v492
        %v494 = vlaneseq
        %v495 = vshrl.u32 %v494, 7
        %v496 = vsub.s32 %v493, %v495
        %v497 = vrot.slane %v490, %v496
        %v498 = vcombine.low %v470, %v477
        %v500 = vunpack.c.l.s4 1983009808
        %v501 = vunpack.c.0.s8 %v500
        %v502 = vlaneseq
        %v503 = vshrl.u32 %v502, 7
        %v504 = vsub.s32 %v501, %v503
        %v505 = vrot.slane %v498, %v504
        %v506 = vcombine.low %v480, %v481
        %v508 = vunpack.c.l.s4 1983009808
        %v509 = vunpack.c.0.s8 %v508
        %v510 = vlaneseq
        %v511 = vshrl.u32 %v510, 7
        %v512 = vsub.s32 %v509, %v511
        %v513 = vrot.slane %v506, %v512
        %v514 = vcombine.low %v489, %v497
        %v515 = vcombine.high %v489, %v497
        %v517 = vunpack.c.l.s4 1934713408
        %v518 = vunpack.c.0.s8 %v517
        %v519 = vlaneseq
        %v520 = vshrl.u32 %v519, 7
        %v521 = vsub.s32 %v518, %v520
        %v522 = vrot.slane %v514, %v521
        %v524 = vunpack.c.l.s4 1934713408
        %v525 = vunpack.c.0.s8 %v524
        %v526 = vlaneseq
        %v527 = vshrl.u32 %v526, 7
        %v528 = vsub.s32 %v525, %v527
        %v529 = vrot.slane %v515, %v528
        %v530 = vcombine.low %v505, %v513
        %v531 = vcombine.high %v505, %v513
        %v533 = vunpack.c.l.s4 1934713408
        %v534 = vunpack.c.0.s8 %v533
        %v535 = vlaneseq
        %v536 = vshrl.u32 %v535, 7
        %v537 = vsub.s32 %v534, %v536
        %v538 = vrot.slane %v530, %v537
        %v540 = vunpack.c.l.s4 1934713408
        %v541 = vunpack.c.0.s8 %v540
        %v542 = vlaneseq
        %v543 = vshrl.u32 %v542, 7
        %v544 = vsub.s32 %v541, %v543
        %v545 = vrot.slane %v531, %v544
        %v546 = vcombine.low %v522, %v538
        %v547 = vcombine.high %v522, %v538
        %v548 = vcombine.low %v529, %v545
        %v549 = vcombine.high %v529, %v545
        %551 = vrot.lane.b32.xlu0 %v400, 120
        %v552 = vpop.permute.xlu0 %551
        %553 = vrot.lane.b32.xlu0 %v400, 112
        %v554 = vpop.permute.xlu0 %553
        %555 = vrot.lane.b32.xlu0 %v400, 104
        %v556 = vpop.permute.xlu0 %555
        %557 = vrot.lane.b32.xlu0 %v400, 96
        %v558 = vpop.permute.xlu0 %557
        %559 = vrot.lane.b32.xlu0 %v552, 96
        %v560 = vpop.permute.xlu0 %559
        %561 = vrot.lane.b32.xlu0 %v554, 96
        %v562 = vpop.permute.xlu0 %561
        %563 = vrot.lane.b32.xlu0 %v556, 96
        %v564 = vpop.permute.xlu0 %563
        %v569 = vcombine.low %v558, %v562
        %v570 = vcombine.high %v558, %v562
        %v572 = vunpack.c.l.s4 1983009808
        %v573 = vunpack.c.0.s8 %v572
        %v574 = vlaneseq
        %v575 = vshrl.u32 %v574, 7
        %v576 = vsub.s32 %v573, %v575
        %v577 = vrot.slane %v569, %v576
        %v579 = vunpack.c.l.s4 1983009808
        %v580 = vunpack.c.0.s8 %v579
        %v581 = vlaneseq
        %v582 = vshrl.u32 %v581, 7
        %v583 = vsub.s32 %v580, %v582
        %v584 = vrot.slane %v570, %v583
        %v585 = vcombine.low %v560, %v564
        %v586 = vcombine.high %v560, %v564
        %v588 = vunpack.c.l.s4 1983009808
        %v589 = vunpack.c.0.s8 %v588
        %v590 = vlaneseq
        %v591 = vshrl.u32 %v590, 7
        %v592 = vsub.s32 %v589, %v591
        %v593 = vrot.slane %v585, %v592
        %v595 = vunpack.c.l.s4 1983009808
        %v596 = vunpack.c.0.s8 %v595
        %v597 = vlaneseq
        %v598 = vshrl.u32 %v597, 7
        %v599 = vsub.s32 %v596, %v598
        %v600 = vrot.slane %v586, %v599
        %v601 = vcombine.low %v577, %v593
        %v602 = vcombine.high %v577, %v593
        %v604 = vunpack.c.l.s4 1934713408
        %v605 = vunpack.c.0.s8 %v604
        %v606 = vlaneseq
        %v607 = vshrl.u32 %v606, 7
        %v608 = vsub.s32 %v605, %v607
        %v609 = vrot.slane %v601, %v608
        %v611 = vunpack.c.l.s4 1934713408
        %v612 = vunpack.c.0.s8 %v611
        %v613 = vlaneseq
        %v614 = vshrl.u32 %v613, 7
        %v615 = vsub.s32 %v612, %v614
        %v616 = vrot.slane %v602, %v615
        %v617 = vcombine.low %v584, %v600
        %v618 = vcombine.high %v584, %v600
        %v620 = vunpack.c.l.s4 1934713408
        %v621 = vunpack.c.0.s8 %v620
        %v622 = vlaneseq
        %v623 = vshrl.u32 %v622, 7
        %v624 = vsub.s32 %v621, %v623
        %v625 = vrot.slane %v617, %v624
        %v627 = vunpack.c.l.s4 1934713408
        %v628 = vunpack.c.0.s8 %v627
        %v629 = vlaneseq
        %v630 = vshrl.u32 %v629, 7
        %v631 = vsub.s32 %v628, %v630
        %v632 = vrot.slane %v618, %v631
        %v633 = vcombine.high %v609, 0.0
        %v634 = vcombine.high %v616, 0.0
        %v635 = vcombine.high %v625, 0.0
        %v636 = vcombine.high %v632, 0.0
        %v637 = vcombine.low %v609, %v616
        %v639 = vunpack.c.l.s4 1983009808
        %v640 = vunpack.c.0.s8 %v639
        %v641 = vlaneseq
        %v642 = vshrl.u32 %v641, 7
        %v643 = vsub.s32 %v640, %v642
        %v644 = vrot.slane %v637, %v643
        %v645 = vcombine.low %v633, %v634
        %v647 = vunpack.c.l.s4 1983009808
        %v648 = vunpack.c.0.s8 %v647
        %v649 = vlaneseq
        %v650 = vshrl.u32 %v649, 7
        %v651 = vsub.s32 %v648, %v650
        %v652 = vrot.slane %v645, %v651
        %v653 = vcombine.low %v625, %v632
        %v655 = vunpack.c.l.s4 1983009808
        %v656 = vunpack.c.0.s8 %v655
        %v657 = vlaneseq
        %v658 = vshrl.u32 %v657, 7
        %v659 = vsub.s32 %v656, %v658
        %v660 = vrot.slane %v653, %v659
        %v661 = vcombine.low %v635, %v636
        %v663 = vunpack.c.l.s4 1983009808
        %v664 = vunpack.c.0.s8 %v663
        %v665 = vlaneseq
        %v666 = vshrl.u32 %v665, 7
        %v667 = vsub.s32 %v664, %v666
        %v668 = vrot.slane %v661, %v667
        %v669 = vcombine.low %v644, %v652
        %v670 = vcombine.high %v644, %v652
        %v672 = vunpack.c.l.s4 1934713408
        %v673 = vunpack.c.0.s8 %v672
        %v674 = vlaneseq
        %v675 = vshrl.u32 %v674, 7
        %v676 = vsub.s32 %v673, %v675
        %v677 = vrot.slane %v669, %v676
        %v679 = vunpack.c.l.s4 1934713408
        %v680 = vunpack.c.0.s8 %v679
        %v681 = vlaneseq
        %v682 = vshrl.u32 %v681, 7
        %v683 = vsub.s32 %v680, %v682
        %v684 = vrot.slane %v670, %v683
        %v685 = vcombine.low %v660, %v668
        %v686 = vcombine.high %v660, %v668
        %v688 = vunpack.c.l.s4 1934713408
        %v689 = vunpack.c.0.s8 %v688
        %v690 = vlaneseq
        %v691 = vshrl.u32 %v690, 7
        %v692 = vsub.s32 %v689, %v691
        %v693 = vrot.slane %v685, %v692
        %v695 = vunpack.c.l.s4 1934713408
        %v696 = vunpack.c.0.s8 %v695
        %v697 = vlaneseq
        %v698 = vshrl.u32 %v697, 7
        %v699 = vsub.s32 %v696, %v698
        %v700 = vrot.slane %v686, %v699
        %v701 = vcombine.low %v677, %v693
        %v702 = vcombine.high %v677, %v693
        %v703 = vcombine.low %v684, %v700
        %v704 = vcombine.high %v684, %v700
        %705 = vrot.lane.b32.xlu0 %v400, 64
        %v706 = vpop.permute.xlu0 %705
        %707 = vrot.lane.b32.xlu0 %v552, 64
        %v708 = vpop.permute.xlu0 %707
        %709 = vrot.lane.b32.xlu0 %v554, 64
        %v710 = vpop.permute.xlu0 %709
        %711 = vrot.lane.b32.xlu0 %v556, 64
        %v712 = vpop.permute.xlu0 %711
        %v717 = vcombine.low %v706, %v710
        %v718 = vcombine.high %v706, %v710
        %v720 = vunpack.c.l.s4 1983009808
        %v721 = vunpack.c.0.s8 %v720
        %v722 = vlaneseq
        %v723 = vshrl.u32 %v722, 7
        %v724 = vsub.s32 %v721, %v723
        %v725 = vrot.slane %v717, %v724
        %v727 = vunpack.c.l.s4 1983009808
        %v728 = vunpack.c.0.s8 %v727
        %v729 = vlaneseq
        %v730 = vshrl.u32 %v729, 7
        %v731 = vsub.s32 %v728, %v730
        %v732 = vrot.slane %v718, %v731
        %v733 = vcombine.low %v708, %v712
        %v734 = vcombine.high %v708, %v712
        %v736 = vunpack.c.l.s4 1983009808
        %v737 = vunpack.c.0.s8 %v736
        %v738 = vlaneseq
        %v739 = vshrl.u32 %v738, 7
        %v740 = vsub.s32 %v737, %v739
        %v741 = vrot.slane %v733, %v740
        %v743 = vunpack.c.l.s4 1983009808
        %v744 = vunpack.c.0.s8 %v743
        %v745 = vlaneseq
        %v746 = vshrl.u32 %v745, 7
        %v747 = vsub.s32 %v744, %v746
        %v748 = vrot.slane %v734, %v747
        %v749 = vcombine.low %v725, %v741
        %v750 = vcombine.high %v725, %v741
        %v752 = vunpack.c.l.s4 1934713408
        %v753 = vunpack.c.0.s8 %v752
        %v754 = vlaneseq
        %v755 = vshrl.u32 %v754, 7
        %v756 = vsub.s32 %v753, %v755
        %v757 = vrot.slane %v749, %v756
        %v759 = vunpack.c.l.s4 1934713408
        %v760 = vunpack.c.0.s8 %v759
        %v761 = vlaneseq
        %v762 = vshrl.u32 %v761, 7
        %v763 = vsub.s32 %v760, %v762
        %v764 = vrot.slane %v750, %v763
        %v765 = vcombine.low %v732, %v748
        %v766 = vcombine.high %v732, %v748
        %v768 = vunpack.c.l.s4 1934713408
        %v769 = vunpack.c.0.s8 %v768
        %v770 = vlaneseq
        %v771 = vshrl.u32 %v770, 7
        %v772 = vsub.s32 %v769, %v771
        %v773 = vrot.slane %v765, %v772
        %v775 = vunpack.c.l.s4 1934713408
        %v776 = vunpack.c.0.s8 %v775
        %v777 = vlaneseq
        %v778 = vshrl.u32 %v777, 7
        %v779 = vsub.s32 %v776, %v778
        %v780 = vrot.slane %v766, %v779
        %v781 = vcombine.high %v757, 0.0
        %v782 = vcombine.high %v764, 0.0
        %v783 = vcombine.high %v773, 0.0
        %v784 = vcombine.high %v780, 0.0
        %v785 = vcombine.low %v757, %v764
        %v787 = vunpack.c.l.s4 1983009808
        %v788 = vunpack.c.0.s8 %v787
        %v789 = vlaneseq
        %v790 = vshrl.u32 %v789, 7
        %v791 = vsub.s32 %v788, %v790
        %v792 = vrot.slane %v785, %v791
        %v793 = vcombine.low %v781, %v782
        %v795 = vunpack.c.l.s4 1983009808
        %v796 = vunpack.c.0.s8 %v795
        %v797 = vlaneseq
        %v798 = vshrl.u32 %v797, 7
        %v799 = vsub.s32 %v796, %v798
        %v800 = vrot.slane %v793, %v799
        %v801 = vcombine.low %v773, %v780
        %v803 = vunpack.c.l.s4 1983009808
        %v804 = vunpack.c.0.s8 %v803
        %v805 = vlaneseq
        %v806 = vshrl.u32 %v805, 7
        %v807 = vsub.s32 %v804, %v806
        %v808 = vrot.slane %v801, %v807
        %v809 = vcombine.low %v783, %v784
        %v811 = vunpack.c.l.s4 1983009808
        %v812 = vunpack.c.0.s8 %v811
        %v813 = vlaneseq
        %v814 = vshrl.u32 %v813, 7
        %v815 = vsub.s32 %v812, %v814
        %v816 = vrot.slane %v809, %v815
        %v817 = vcombine.low %v792, %v800
        %v818 = vcombine.high %v792, %v800
        %v820 = vunpack.c.l.s4 1934713408
        %v821 = vunpack.c.0.s8 %v820
        %v822 = vlaneseq
        %v823 = vshrl.u32 %v822, 7
        %v824 = vsub.s32 %v821, %v823
        %v825 = vrot.slane %v817, %v824
        %v827 = vunpack.c.l.s4 1934713408
        %v828 = vunpack.c.0.s8 %v827
        %v829 = vlaneseq
        %v830 = vshrl.u32 %v829, 7
        %v831 = vsub.s32 %v828, %v830
        %v832 = vrot.slane %v818, %v831
        %v833 = vcombine.low %v808, %v816
        %v834 = vcombine.high %v808, %v816
        %v836 = vunpack.c.l.s4 1934713408
        %v837 = vunpack.c.0.s8 %v836
        %v838 = vlaneseq
        %v839 = vshrl.u32 %v838, 7
        %v840 = vsub.s32 %v837, %v839
        %v841 = vrot.slane %v833, %v840
        %v843 = vunpack.c.l.s4 1934713408
        %v844 = vunpack.c.0.s8 %v843
        %v845 = vlaneseq
        %v846 = vshrl.u32 %v845, 7
        %v847 = vsub.s32 %v844, %v846
        %v848 = vrot.slane %v834, %v847
        %v849 = vcombine.low %v825, %v841
        %v850 = vcombine.high %v825, %v841
        %v851 = vcombine.low %v832, %v848
        %v852 = vcombine.high %v832, %v848
        %vm853 = vcmask 64512
        %v855 = vsel %vm853, %v546, 0
        %v858 = vsel %vm853, %v701, 0
        %860 = vmatprep.subr.mxu0 0.0
        %861 = vmatpush1.xpose.msra.mxu0 0.0
        %862 = vmatprep.subr.mxu0 0.0
        %863 = vmatpush1.xpose.msra.mxu0 0.0
        %864 = vmatprep.subr.mxu0 0.0
        %865 = vmatpush1.xpose.msra.mxu0 0.0
        %866 = vmatprep.subr.mxu0 0.0
        %867 = vmatpush1.xpose.msra.mxu0 0.0
        %868 = vmatprep.subr.mxu0 0.0
        %869 = vmatpush1.xpose.msra.mxu0 0.0
        %870 = vmatprep.subr.mxu0 0.0
        %871 = vmatpush1.xpose.msra.mxu0 0.0
        %872 = vmatprep.subr.mxu0 0.0
        %873 = vmatpush1.xpose.msra.mxu0 0.0
        %874 = vmatprep.subr.mxu0 0.0
        %875 = vmatpush1.xpose.msra.mxu0 0.0
        %876 = vmatprep.subr.mxu0 0.0
        %877 = vmatpush1.xpose.msra.mxu0 0.0
        %878 = vmatprep.subr.mxu0 0.0
        %879 = vmatpush1.xpose.msra.mxu0 0.0
        %880 = vmatprep.subr.mxu0 0.0
        %881 = vmatpush1.xpose.msra.mxu0 0.0
        %882 = vmatprep.subr.mxu0 0.0
        %883 = vmatpush1.xpose.msra.mxu0 0.0
        %884 = vmatprep.subr.mxu0 0.0
        %885 = vmatpush1.xpose.msra.mxu0 0.0
        %886 = vmatprep.subr.mxu0 0.0
        %887 = vmatpush1.xpose.msra.mxu0 0.0
        %888 = vmatprep.subr.mxu0 0.0
        %889 = vmatpush1.xpose.msra.mxu0 0.0
        %890 = vmatprep.subr.mxu0 0.0
        %891 = vmatpush1.xpose.msra.mxu0 %v858
        %892 = vmatprep.subr.mxu0 0.0
        %893 = vmatpush2.xpose.msra.mxu0 0.0
        %894 = vmatprep.subr.mxu0 0.0
        %895 = vmatpush2.xpose.msra.mxu0 0.0
        %896 = vmatprep.subr.mxu0 0.0
        %897 = vmatpush2.xpose.msra.mxu0 0.0
        %898 = vmatprep.subr.mxu0 0.0
        %899 = vmatpush2.xpose.msra.mxu0 0.0
        %900 = vmatprep.subr.mxu0 0.0
        %901 = vmatpush2.xpose.msra.mxu0 0.0
        %902 = vmatprep.subr.mxu0 0.0
        %903 = vmatpush2.xpose.msra.mxu0 0.0
        %904 = vmatprep.subr.mxu0 0.0
        %905 = vmatpush2.xpose.msra.mxu0 0.0
        %906 = vmatprep.subr.mxu0 0.0
        %907 = vmatpush2.xpose.msra.mxu0 0.0
        %908 = vmatprep.subr.mxu0 0.0
        %909 = vmatpush2.xpose.msra.mxu0 0.0
        %910 = vmatprep.subr.mxu0 0.0
        %911 = vmatpush2.xpose.msra.mxu0 0.0
        %912 = vmatprep.subr.mxu0 0.0
        %913 = vmatpush2.xpose.msra.mxu0 0.0
        %914 = vmatprep.subr.mxu0 0.0
        %915 = vmatpush2.xpose.msra.mxu0 0.0
        %916 = vmatprep.subr.mxu0 0.0
        %917 = vmatpush2.xpose.msra.mxu0 0.0
        %918 = vmatprep.subr.mxu0 0.0
        %919 = vmatpush2.xpose.msra.mxu0 0.0
        %920 = vmatprep.subr.mxu0 0.0
        %921 = vmatpush2.xpose.msra.mxu0 0.0
        %922 = vmatprep.subr.mxu0 0.0
        %923 = vmatpush2.xpose.msra.mxu0 0.0
        %924 = vmatprep.mubr.f32.mxu0 0.0
        %925 = vmatmul.mubr.f32.gmra.mxu0 %v855
        %v926 = vpop.f32.mrf.mxu0
        %v927 = vadd.f32 0.0, %v926
        %v928 = vpop.f32.mrf.mxu0
        %929 = vdwg.mxu0
        %v931 = vsel %vm853, %v547, 0
        %v934 = vsel %vm853, %v702, 0
        %936 = vmatprep.subr.mxu0 0.0
        %937 = vmatpush1.xpose.msra.mxu0 0.0
        %938 = vmatprep.subr.mxu0 0.0
        %939 = vmatpush1.xpose.msra.mxu0 0.0
        %940 = vmatprep.subr.mxu0 0.0
        %941 = vmatpush1.xpose.msra.mxu0 0.0
        %942 = vmatprep.subr.mxu0 0.0
        %943 = vmatpush1.xpose.msra.mxu0 0.0
        %944 = vmatprep.subr.mxu0 0.0
        %945 = vmatpush1.xpose.msra.mxu0 0.0
        %946 = vmatprep.subr.mxu0 0.0
        %947 = vmatpush1.xpose.msra.mxu0 0.0
        %948 = vmatprep.subr.mxu0 0.0
        %949 = vmatpush1.xpose.msra.mxu0 0.0
        %950 = vmatprep.subr.mxu0 0.0
        %951 = vmatpush1.xpose.msra.mxu0 0.0
        %952 = vmatprep.subr.mxu0 0.0
        %953 = vmatpush1.xpose.msra.mxu0 0.0
        %954 = vmatprep.subr.mxu0 0.0
        %955 = vmatpush1.xpose.msra.mxu0 0.0
        %956 = vmatprep.subr.mxu0 0.0
        %957 = vmatpush1.xpose.msra.mxu0 0.0
        %958 = vmatprep.subr.mxu0 0.0
        %959 = vmatpush1.xpose.msra.mxu0 0.0
        %960 = vmatprep.subr.mxu0 0.0
        %961 = vmatpush1.xpose.msra.mxu0 0.0
        %962 = vmatprep.subr.mxu0 0.0
        %963 = vmatpush1.xpose.msra.mxu0 0.0
        %964 = vmatprep.subr.mxu0 0.0
        %965 = vmatpush1.xpose.msra.mxu0 0.0
        %966 = vmatprep.subr.mxu0 0.0
        %967 = vmatpush1.xpose.msra.mxu0 %v934
        %968 = vmatprep.subr.mxu0 0.0
        %969 = vmatpush2.xpose.msra.mxu0 0.0
        %970 = vmatprep.subr.mxu0 0.0
        %971 = vmatpush2.xpose.msra.mxu0 0.0
        %972 = vmatprep.subr.mxu0 0.0
        %973 = vmatpush2.xpose.msra.mxu0 0.0
        %974 = vmatprep.subr.mxu0 0.0
        %975 = vmatpush2.xpose.msra.mxu0 0.0
        %976 = vmatprep.subr.mxu0 0.0
        %977 = vmatpush2.xpose.msra.mxu0 0.0
        %978 = vmatprep.subr.mxu0 0.0
        %979 = vmatpush2.xpose.msra.mxu0 0.0
        %980 = vmatprep.subr.mxu0 0.0
        %981 = vmatpush2.xpose.msra.mxu0 0.0
        %982 = vmatprep.subr.mxu0 0.0
        %983 = vmatpush2.xpose.msra.mxu0 0.0
        %984 = vmatprep.subr.mxu0 0.0
        %985 = vmatpush2.xpose.msra.mxu0 0.0
        %986 = vmatprep.subr.mxu0 0.0
        %987 = vmatpush2.xpose.msra.mxu0 0.0
        %988 = vmatprep.subr.mxu0 0.0
        %989 = vmatpush2.xpose.msra.mxu0 0.0
        %990 = vmatprep.subr.mxu0 0.0
        %991 = vmatpush2.xpose.msra.mxu0 0.0
        %992 = vmatprep.subr.mxu0 0.0
        %993 = vmatpush2.xpose.msra.mxu0 0.0
        %994 = vmatprep.subr.mxu0 0.0
        %995 = vmatpush2.xpose.msra.mxu0 0.0
        %996 = vmatprep.subr.mxu0 0.0
        %997 = vmatpush2.xpose.msra.mxu0 0.0
        %998 = vmatprep.subr.mxu0 0.0
        %999 = vmatpush2.xpose.msra.mxu0 0.0
        %1000 = vmatprep.mubr.f32.mxu0 0.0
        %1001 = vmatmul.mubr.f32.gmra.mxu0 %v931
        %v1002 = vpop.f32.mrf.mxu0
        %v1003 = vadd.f32 0.0, %v1002
        %v1004 = vpop.f32.mrf.mxu0
        %1005 = vdwg.mxu0
        %v1007 = vsel %vm853, %v548, 0
        %v1010 = vsel %vm853, %v703, 0
        %1012 = vmatprep.subr.mxu0 0.0
        %1013 = vmatpush1.xpose.msra.mxu0 0.0
        %1014 = vmatprep.subr.mxu0 0.0
        %1015 = vmatpush1.xpose.msra.mxu0 0.0
        %1016 = vmatprep.subr.mxu0 0.0
        %1017 = vmatpush1.xpose.msra.mxu0 0.0
        %1018 = vmatprep.subr.mxu0 0.0
        %1019 = vmatpush1.xpose.msra.mxu0 0.0
        %1020 = vmatprep.subr.mxu0 0.0
        %1021 = vmatpush1.xpose.msra.mxu0 0.0
        %1022 = vmatprep.subr.mxu0 0.0
        %1023 = vmatpush1.xpose.msra.mxu0 0.0
        %1024 = vmatprep.subr.mxu0 0.0
        %1025 = vmatpush1.xpose.msra.mxu0 0.0
        %1026 = vmatprep.subr.mxu0 0.0
        %1027 = vmatpush1.xpose.msra.mxu0 0.0
        %1028 = vmatprep.subr.mxu0 0.0
        %1029 = vmatpush1.xpose.msra.mxu0 0.0
        %1030 = vmatprep.subr.mxu0 0.0
        %1031 = vmatpush1.xpose.msra.mxu0 0.0
        %1032 = vmatprep.subr.mxu0 0.0
        %1033 = vmatpush1.xpose.msra.mxu0 0.0
        %1034 = vmatprep.subr.mxu0 0.0
        %1035 = vmatpush1.xpose.msra.mxu0 0.0
        %1036 = vmatprep.subr.mxu0 0.0
        %1037 = vmatpush1.xpose.msra.mxu0 0.0
        %1038 = vmatprep.subr.mxu0 0.0
        %1039 = vmatpush1.xpose.msra.mxu0 0.0
        %1040 = vmatprep.subr.mxu0 0.0
        %1041 = vmatpush1.xpose.msra.mxu0 0.0
        %1042 = vmatprep.subr.mxu0 0.0
        %1043 = vmatpush1.xpose.msra.mxu0 %v1010
        %1044 = vmatprep.subr.mxu0 0.0
        %1045 = vmatpush2.xpose.msra.mxu0 0.0
        %1046 = vmatprep.subr.mxu0 0.0
        %1047 = vmatpush2.xpose.msra.mxu0 0.0
        %1048 = vmatprep.subr.mxu0 0.0
        %1049 = vmatpush2.xpose.msra.mxu0 0.0
        %1050 = vmatprep.subr.mxu0 0.0
        %1051 = vmatpush2.xpose.msra.mxu0 0.0
        %1052 = vmatprep.subr.mxu0 0.0
        %1053 = vmatpush2.xpose.msra.mxu0 0.0
        %1054 = vmatprep.subr.mxu0 0.0
        %1055 = vmatpush2.xpose.msra.mxu0 0.0
        %1056 = vmatprep.subr.mxu0 0.0
        %1057 = vmatpush2.xpose.msra.mxu0 0.0
        %1058 = vmatprep.subr.mxu0 0.0
        %1059 = vmatpush2.xpose.msra.mxu0 0.0
        %1060 = vmatprep.subr.mxu0 0.0
        %1061 = vmatpush2.xpose.msra.mxu0 0.0
        %1062 = vmatprep.subr.mxu0 0.0
        %1063 = vmatpush2.xpose.msra.mxu0 0.0
        %1064 = vmatprep.subr.mxu0 0.0
        %1065 = vmatpush2.xpose.msra.mxu0 0.0
        %1066 = vmatprep.subr.mxu0 0.0
        %1067 = vmatpush2.xpose.msra.mxu0 0.0
        %1068 = vmatprep.subr.mxu0 0.0
        %1069 = vmatpush2.xpose.msra.mxu0 0.0
        %1070 = vmatprep.subr.mxu0 0.0
        %1071 = vmatpush2.xpose.msra.mxu0 0.0
        %1072 = vmatprep.subr.mxu0 0.0
        %1073 = vmatpush2.xpose.msra.mxu0 0.0
        %1074 = vmatprep.subr.mxu0 0.0
        %1075 = vmatpush2.xpose.msra.mxu0 0.0
        %1076 = vmatprep.mubr.f32.mxu0 0.0
        %1077 = vmatmul.mubr.f32.gmra.mxu0 %v1007
        %v1078 = vpop.f32.mrf.mxu0
        %v1079 = vadd.f32 0.0, %v1078
        %v1080 = vpop.f32.mrf.mxu0
        %1081 = vdwg.mxu0
        %v1083 = vsel %vm853, %v549, 0
        %v1086 = vsel %vm853, %v704, 0
        %1088 = vmatprep.subr.mxu0 0.0
        %1089 = vmatpush1.xpose.msra.mxu0 0.0
        %1090 = vmatprep.subr.mxu0 0.0
        %1091 = vmatpush1.xpose.msra.mxu0 0.0
        %1092 = vmatprep.subr.mxu0 0.0
        %1093 = vmatpush1.xpose.msra.mxu0 0.0
        %1094 = vmatprep.subr.mxu0 0.0
        %1095 = vmatpush1.xpose.msra.mxu0 0.0
        %1096 = vmatprep.subr.mxu0 0.0
        %1097 = vmatpush1.xpose.msra.mxu0 0.0
        %1098 = vmatprep.subr.mxu0 0.0
        %1099 = vmatpush1.xpose.msra.mxu0 0.0
        %1100 = vmatprep.subr.mxu0 0.0
        %1101 = vmatpush1.xpose.msra.mxu0 0.0
        %1102 = vmatprep.subr.mxu0 0.0
        %1103 = vmatpush1.xpose.msra.mxu0 0.0
        %1104 = vmatprep.subr.mxu0 0.0
        %1105 = vmatpush1.xpose.msra.mxu0 0.0
        %1106 = vmatprep.subr.mxu0 0.0
        %1107 = vmatpush1.xpose.msra.mxu0 0.0
        %1108 = vmatprep.subr.mxu0 0.0
        %1109 = vmatpush1.xpose.msra.mxu0 0.0
        %1110 = vmatprep.subr.mxu0 0.0
        %1111 = vmatpush1.xpose.msra.mxu0 0.0
        %1112 = vmatprep.subr.mxu0 0.0
        %1113 = vmatpush1.xpose.msra.mxu0 0.0
        %1114 = vmatprep.subr.mxu0 0.0
        %1115 = vmatpush1.xpose.msra.mxu0 0.0
        %1116 = vmatprep.subr.mxu0 0.0
        %1117 = vmatpush1.xpose.msra.mxu0 0.0
        %1118 = vmatprep.subr.mxu0 0.0
        %1119 = vmatpush1.xpose.msra.mxu0 %v1086
        %1120 = vmatprep.subr.mxu0 0.0
        %1121 = vmatpush2.xpose.msra.mxu0 0.0
        %1122 = vmatprep.subr.mxu0 0.0
        %1123 = vmatpush2.xpose.msra.mxu0 0.0
        %1124 = vmatprep.subr.mxu0 0.0
        %1125 = vmatpush2.xpose.msra.mxu0 0.0
        %1126 = vmatprep.subr.mxu0 0.0
        %1127 = vmatpush2.xpose.msra.mxu0 0.0
        %1128 = vmatprep.subr.mxu0 0.0
        %1129 = vmatpush2.xpose.msra.mxu0 0.0
        %1130 = vmatprep.subr.mxu0 0.0
        %1131 = vmatpush2.xpose.msra.mxu0 0.0
        %1132 = vmatprep.subr.mxu0 0.0
        %1133 = vmatpush2.xpose.msra.mxu0 0.0
        %1134 = vmatprep.subr.mxu0 0.0
        %1135 = vmatpush2.xpose.msra.mxu0 0.0
        %1136 = vmatprep.subr.mxu0 0.0
        %1137 = vmatpush2.xpose.msra.mxu0 0.0
        %1138 = vmatprep.subr.mxu0 0.0
        %1139 = vmatpush2.xpose.msra.mxu0 0.0
        %1140 = vmatprep.subr.mxu0 0.0
        %1141 = vmatpush2.xpose.msra.mxu0 0.0
        %1142 = vmatprep.subr.mxu0 0.0
        %1143 = vmatpush2.xpose.msra.mxu0 0.0
        %1144 = vmatprep.subr.mxu0 0.0
        %1145 = vmatpush2.xpose.msra.mxu0 0.0
        %1146 = vmatprep.subr.mxu0 0.0
        %1147 = vmatpush2.xpose.msra.mxu0 0.0
        %1148 = vmatprep.subr.mxu0 0.0
        %1149 = vmatpush2.xpose.msra.mxu0 0.0
        %1150 = vmatprep.subr.mxu0 0.0
        %1151 = vmatpush2.xpose.msra.mxu0 0.0
        %1152 = vmatprep.mubr.f32.mxu0 0.0
        %1153 = vmatmul.mubr.f32.gmra.mxu0 %v1083
        %v1154 = vpop.f32.mrf.mxu0
        %v1155 = vadd.f32 0.0, %v1154
        %v1156 = vpop.f32.mrf.mxu0
        %1157 = vdwg.mxu0
        %v1158 = vsel %vm853, %v927, -inf
        %1159 = vmax.xlane.f32.xlu0 %v1158
        %v1160 = vpop.xlane.xlu0 %1159
        %v1161 = vsel %vm853, %v1003, -inf
        %1162 = vmax.xlane.f32.xlu0 %v1161
        %v1163 = vpop.xlane.xlu0 %1162
        %v1164 = vsel %vm853, %v1079, -inf
        %1165 = vmax.xlane.f32.xlu0 %v1164
        %v1166 = vpop.xlane.xlu0 %1165
        %v1167 = vsel %vm853, %v1155, -inf
        %1168 = vmax.xlane.f32.xlu0 %v1167
        %v1169 = vpop.xlane.xlu0 %1168
        %v1170 = vsub.f32 %v927, %v1160
        %v1171 = vsub.f32 %v1003, %v1163
        %v1172 = vsub.f32 %v1079, %v1166
        %v1173 = vsub.f32 %v1155, %v1169
        %v1174 = vmul.f32 %v1170, 1.442695
        %v1175 = vpow.pop %v1174
        %v1176 = vmul.f32 %v1171, 1.442695
        %v1177 = vpow.pop %v1176
        %v1178 = vmul.f32 %v1172, 1.442695
        %v1179 = vpow.pop %v1178
        %v1180 = vmul.f32 %v1173, 1.442695
        %v1181 = vpow.pop %v1180
        %v1182 = vsel %vm853, %v1175, 0.0
        %1183 = vadd.xlane.f32.xlu0 %v1182
        %v1184 = vpop.xlane.xlu0 %1183
        %v1185 = vsel %vm853, %v1177, 0.0
        %1186 = vadd.xlane.f32.xlu0 %v1185
        %v1187 = vpop.xlane.xlu0 %1186
        %v1188 = vsel %vm853, %v1179, 0.0
        %1189 = vadd.xlane.f32.xlu0 %v1188
        %v1190 = vpop.xlane.xlu0 %1189
        %v1191 = vsel %vm853, %v1181, 0.0
        %1192 = vadd.xlane.f32.xlu0 %v1191
        %v1193 = vpop.xlane.xlu0 %1192
        %v1195 = vsel %vm853, %v1175, 0
        %1197 = vmatprep.subr.mxu0 0.0
        %1198 = vmatpush1.msra.mxu0 0.0
        %1199 = vmatprep.subr.mxu0 0.0
        %1200 = vmatpush1.msra.mxu0 0.0
        %1201 = vmatprep.subr.mxu0 0.0
        %1202 = vmatpush1.msra.mxu0 0.0
        %1203 = vmatprep.subr.mxu0 0.0
        %1204 = vmatpush1.msra.mxu0 0.0
        %1205 = vmatprep.subr.mxu0 0.0
        %1206 = vmatpush1.msra.mxu0 0.0
        %1207 = vmatprep.subr.mxu0 0.0
        %1208 = vmatpush1.msra.mxu0 0.0
        %1209 = vmatprep.subr.mxu0 0.0
        %1210 = vmatpush1.msra.mxu0 0.0
        %1211 = vmatprep.subr.mxu0 0.0
        %1212 = vmatpush1.msra.mxu0 0.0
        %1213 = vmatprep.subr.mxu0 0.0
        %1214 = vmatpush1.msra.mxu0 0.0
        %1215 = vmatprep.subr.mxu0 0.0
        %1216 = vmatpush1.msra.mxu0 0.0
        %1217 = vmatprep.subr.mxu0 0.0
        %1218 = vmatpush1.msra.mxu0 0.0
        %1219 = vmatprep.subr.mxu0 0.0
        %1220 = vmatpush1.msra.mxu0 0.0
        %1221 = vmatprep.subr.mxu0 0.0
        %1222 = vmatpush1.msra.mxu0 0.0
        %1223 = vmatprep.subr.mxu0 0.0
        %1224 = vmatpush1.msra.mxu0 0.0
        %1225 = vmatprep.subr.mxu0 0.0
        %1226 = vmatpush1.msra.mxu0 0.0
        %1227 = vmatprep.subr.mxu0 0.0
        %1228 = vmatpush1.msra.mxu0 %v849
        %1229 = vmatprep.subr.mxu0 0.0
        %1230 = vmatpush2.msra.mxu0 0.0
        %1231 = vmatprep.subr.mxu0 0.0
        %1232 = vmatpush2.msra.mxu0 0.0
        %1233 = vmatprep.subr.mxu0 0.0
        %1234 = vmatpush2.msra.mxu0 0.0
        %1235 = vmatprep.subr.mxu0 0.0
        %1236 = vmatpush2.msra.mxu0 0.0
        %1237 = vmatprep.subr.mxu0 0.0
        %1238 = vmatpush2.msra.mxu0 0.0
        %1239 = vmatprep.subr.mxu0 0.0
        %1240 = vmatpush2.msra.mxu0 0.0
        %1241 = vmatprep.subr.mxu0 0.0
        %1242 = vmatpush2.msra.mxu0 0.0
        %1243 = vmatprep.subr.mxu0 0.0
        %1244 = vmatpush2.msra.mxu0 0.0
        %1245 = vmatprep.subr.mxu0 0.0
        %1246 = vmatpush2.msra.mxu0 0.0
        %1247 = vmatprep.subr.mxu0 0.0
        %1248 = vmatpush2.msra.mxu0 0.0
        %1249 = vmatprep.subr.mxu0 0.0
        %1250 = vmatpush2.msra.mxu0 0.0
        %1251 = vmatprep.subr.mxu0 0.0
        %1252 = vmatpush2.msra.mxu0 0.0
        %1253 = vmatprep.subr.mxu0 0.0
        %1254 = vmatpush2.msra.mxu0 0.0
        %1255 = vmatprep.subr.mxu0 0.0
        %1256 = vmatpush2.msra.mxu0 0.0
        %1257 = vmatprep.subr.mxu0 0.0
        %1258 = vmatpush2.msra.mxu0 0.0
        %1259 = vmatprep.subr.mxu0 0.0
        %1260 = vmatpush2.msra.mxu0 0.0
        %1261 = vmatprep.mubr.f32.mxu0 0.0
        %1262 = vmatmul.mubr.f32.gmra.mxu0 %v1195
        %v1263 = vpop.f32.mrf.mxu0
        %v1264 = vadd.f32 0.0, %v1263
        %v1265 = vpop.f32.mrf.mxu0
        %1266 = vdwg.mxu0
        %v1268 = vsel %vm853, %v1177, 0
        %1270 = vmatprep.subr.mxu0 0.0
        %1271 = vmatpush1.msra.mxu0 0.0
        %1272 = vmatprep.subr.mxu0 0.0
        %1273 = vmatpush1.msra.mxu0 0.0
        %1274 = vmatprep.subr.mxu0 0.0
        %1275 = vmatpush1.msra.mxu0 0.0
        %1276 = vmatprep.subr.mxu0 0.0
        %1277 = vmatpush1.msra.mxu0 0.0
        %1278 = vmatprep.subr.mxu0 0.0
        %1279 = vmatpush1.msra.mxu0 0.0
        %1280 = vmatprep.subr.mxu0 0.0
        %1281 = vmatpush1.msra.mxu0 0.0
        %1282 = vmatprep.subr.mxu0 0.0
        %1283 = vmatpush1.msra.mxu0 0.0
        %1284 = vmatprep.subr.mxu0 0.0
        %1285 = vmatpush1.msra.mxu0 0.0
        %1286 = vmatprep.subr.mxu0 0.0
        %1287 = vmatpush1.msra.mxu0 0.0
        %1288 = vmatprep.subr.mxu0 0.0
        %1289 = vmatpush1.msra.mxu0 0.0
        %1290 = vmatprep.subr.mxu0 0.0
        %1291 = vmatpush1.msra.mxu0 0.0
        %1292 = vmatprep.subr.mxu0 0.0
        %1293 = vmatpush1.msra.mxu0 0.0
        %1294 = vmatprep.subr.mxu0 0.0
        %1295 = vmatpush1.msra.mxu0 0.0
        %1296 = vmatprep.subr.mxu0 0.0
        %1297 = vmatpush1.msra.mxu0 0.0
        %1298 = vmatprep.subr.mxu0 0.0
        %1299 = vmatpush1.msra.mxu0 0.0
        %1300 = vmatprep.subr.mxu0 0.0
        %1301 = vmatpush1.msra.mxu0 %v850
        %1302 = vmatprep.subr.mxu0 0.0
        %1303 = vmatpush2.msra.mxu0 0.0
        %1304 = vmatprep.subr.mxu0 0.0
        %1305 = vmatpush2.msra.mxu0 0.0
        %1306 = vmatprep.subr.mxu0 0.0
        %1307 = vmatpush2.msra.mxu0 0.0
        %1308 = vmatprep.subr.mxu0 0.0
        %1309 = vmatpush2.msra.mxu0 0.0
        %1310 = vmatprep.subr.mxu0 0.0
        %1311 = vmatpush2.msra.mxu0 0.0
        %1312 = vmatprep.subr.mxu0 0.0
        %1313 = vmatpush2.msra.mxu0 0.0
        %1314 = vmatprep.subr.mxu0 0.0
        %1315 = vmatpush2.msra.mxu0 0.0
        %1316 = vmatprep.subr.mxu0 0.0
        %1317 = vmatpush2.msra.mxu0 0.0
        %1318 = vmatprep.subr.mxu0 0.0
        %1319 = vmatpush2.msra.mxu0 0.0
        %1320 = vmatprep.subr.mxu0 0.0
        %1321 = vmatpush2.msra.mxu0 0.0
        %1322 = vmatprep.subr.mxu0 0.0
        %1323 = vmatpush2.msra.mxu0 0.0
        %1324 = vmatprep.subr.mxu0 0.0
        %1325 = vmatpush2.msra.mxu0 0.0
        %1326 = vmatprep.subr.mxu0 0.0
        %1327 = vmatpush2.msra.mxu0 0.0
        %1328 = vmatprep.subr.mxu0 0.0
        %1329 = vmatpush2.msra.mxu0 0.0
        %1330 = vmatprep.subr.mxu0 0.0
        %1331 = vmatpush2.msra.mxu0 0.0
        %1332 = vmatprep.subr.mxu0 0.0
        %1333 = vmatpush2.msra.mxu0 0.0
        %1334 = vmatprep.mubr.f32.mxu0 0.0
        %1335 = vmatmul.mubr.f32.gmra.mxu0 %v1268
        %v1336 = vpop.f32.mrf.mxu0
        %v1337 = vadd.f32 0.0, %v1336
        %v1338 = vpop.f32.mrf.mxu0
        %1339 = vdwg.mxu0
        %v1341 = vsel %vm853, %v1179, 0
        %1343 = vmatprep.subr.mxu0 0.0
        %1344 = vmatpush1.msra.mxu0 0.0
        %1345 = vmatprep.subr.mxu0 0.0
        %1346 = vmatpush1.msra.mxu0 0.0
        %1347 = vmatprep.subr.mxu0 0.0
        %1348 = vmatpush1.msra.mxu0 0.0
        %1349 = vmatprep.subr.mxu0 0.0
        %1350 = vmatpush1.msra.mxu0 0.0
        %1351 = vmatprep.subr.mxu0 0.0
        %1352 = vmatpush1.msra.mxu0 0.0
        %1353 = vmatprep.subr.mxu0 0.0
        %1354 = vmatpush1.msra.mxu0 0.0
        %1355 = vmatprep.subr.mxu0 0.0
        %1356 = vmatpush1.msra.mxu0 0.0
        %1357 = vmatprep.subr.mxu0 0.0
        %1358 = vmatpush1.msra.mxu0 0.0
        %1359 = vmatprep.subr.mxu0 0.0
        %1360 = vmatpush1.msra.mxu0 0.0
        %1361 = vmatprep.subr.mxu0 0.0
        %1362 = vmatpush1.msra.mxu0 0.0
        %1363 = vmatprep.subr.mxu0 0.0
        %1364 = vmatpush1.msra.mxu0 0.0
        %1365 = vmatprep.subr.mxu0 0.0
        %1366 = vmatpush1.msra.mxu0 0.0
        %1367 = vmatprep.subr.mxu0 0.0
        %1368 = vmatpush1.msra.mxu0 0.0
        %1369 = vmatprep.subr.mxu0 0.0
        %1370 = vmatpush1.msra.mxu0 0.0
        %1371 = vmatprep.subr.mxu0 0.0
        %1372 = vmatpush1.msra.mxu0 0.0
        %1373 = vmatprep.subr.mxu0 0.0
        %1374 = vmatpush1.msra.mxu0 %v851
        %1375 = vmatprep.subr.mxu0 0.0
        %1376 = vmatpush2.msra.mxu0 0.0
        %1377 = vmatprep.subr.mxu0 0.0
        %1378 = vmatpush2.msra.mxu0 0.0
        %1379 = vmatprep.subr.mxu0 0.0
        %1380 = vmatpush2.msra.mxu0 0.0
        %1381 = vmatprep.subr.mxu0 0.0
        %1382 = vmatpush2.msra.mxu0 0.0
        %1383 = vmatprep.subr.mxu0 0.0
        %1384 = vmatpush2.msra.mxu0 0.0
        %1385 = vmatprep.subr.mxu0 0.0
        %1386 = vmatpush2.msra.mxu0 0.0
        %1387 = vmatprep.subr.mxu0 0.0
        %1388 = vmatpush2.msra.mxu0 0.0
        %1389 = vmatprep.subr.mxu0 0.0
        %1390 = vmatpush2.msra.mxu0 0.0
        %1391 = vmatprep.subr.mxu0 0.0
        %1392 = vmatpush2.msra.mxu0 0.0
        %1393 = vmatprep.subr.mxu0 0.0
        %1394 = vmatpush2.msra.mxu0 0.0
        %1395 = vmatprep.subr.mxu0 0.0
        %1396 = vmatpush2.msra.mxu0 0.0
        %1397 = vmatprep.subr.mxu0 0.0
        %1398 = vmatpush2.msra.mxu0 0.0
        %1399 = vmatprep.subr.mxu0 0.0
        %1400 = vmatpush2.msra.mxu0 0.0
        %1401 = vmatprep.subr.mxu0 0.0
        %1402 = vmatpush2.msra.mxu0 0.0
        %1403 = vmatprep.subr.mxu0 0.0
        %1404 = vmatpush2.msra.mxu0 0.0
        %1405 = vmatprep.subr.mxu0 0.0
        %1406 = vmatpush2.msra.mxu0 0.0
        %1407 = vmatprep.mubr.f32.mxu0 0.0
        %1408 = vmatmul.mubr.f32.gmra.mxu0 %v1341
        %v1409 = vpop.f32.mrf.mxu0
        %v1410 = vadd.f32 0.0, %v1409
        %v1411 = vpop.f32.mrf.mxu0
        %1412 = vdwg.mxu0
        %v1414 = vsel %vm853, %v1181, 0
        %1416 = vmatprep.subr.mxu0 0.0
        %1417 = vmatpush1.msra.mxu0 0.0
        %1418 = vmatprep.subr.mxu0 0.0
        %1419 = vmatpush1.msra.mxu0 0.0
        %1420 = vmatprep.subr.mxu0 0.0
        %1421 = vmatpush1.msra.mxu0 0.0
        %1422 = vmatprep.subr.mxu0 0.0
        %1423 = vmatpush1.msra.mxu0 0.0
        %1424 = vmatprep.subr.mxu0 0.0
        %1425 = vmatpush1.msra.mxu0 0.0
        %1426 = vmatprep.subr.mxu0 0.0
        %1427 = vmatpush1.msra.mxu0 0.0
        %1428 = vmatprep.subr.mxu0 0.0
        %1429 = vmatpush1.msra.mxu0 0.0
        %1430 = vmatprep.subr.mxu0 0.0
        %1431 = vmatpush1.msra.mxu0 0.0
        %1432 = vmatprep.subr.mxu0 0.0
        %1433 = vmatpush1.msra.mxu0 0.0
        %1434 = vmatprep.subr.mxu0 0.0
        %1435 = vmatpush1.msra.mxu0 0.0
        %1436 = vmatprep.subr.mxu0 0.0
        %1437 = vmatpush1.msra.mxu0 0.0
        %1438 = vmatprep.subr.mxu0 0.0
        %1439 = vmatpush1.msra.mxu0 0.0
        %1440 = vmatprep.subr.mxu0 0.0
        %1441 = vmatpush1.msra.mxu0 0.0
        %1442 = vmatprep.subr.mxu0 0.0
        %1443 = vmatpush1.msra.mxu0 0.0
        %1444 = vmatprep.subr.mxu0 0.0
        %1445 = vmatpush1.msra.mxu0 0.0
        %1446 = vmatprep.subr.mxu0 0.0
        %1447 = vmatpush1.msra.mxu0 %v852
        %1448 = vmatprep.subr.mxu0 0.0
        %1449 = vmatpush2.msra.mxu0 0.0
        %1450 = vmatprep.subr.mxu0 0.0
        %1451 = vmatpush2.msra.mxu0 0.0
        %1452 = vmatprep.subr.mxu0 0.0
        %1453 = vmatpush2.msra.mxu0 0.0
        %1454 = vmatprep.subr.mxu0 0.0
        %1455 = vmatpush2.msra.mxu0 0.0
        %1456 = vmatprep.subr.mxu0 0.0
        %1457 = vmatpush2.msra.mxu0 0.0
        %1458 = vmatprep.subr.mxu0 0.0
        %1459 = vmatpush2.msra.mxu0 0.0
        %1460 = vmatprep.subr.mxu0 0.0
        %1461 = vmatpush2.msra.mxu0 0.0
        %1462 = vmatprep.subr.mxu0 0.0
        %1463 = vmatpush2.msra.mxu0 0.0
        %1464 = vmatprep.subr.mxu0 0.0
        %1465 = vmatpush2.msra.mxu0 0.0
        %1466 = vmatprep.subr.mxu0 0.0
        %1467 = vmatpush2.msra.mxu0 0.0
        %1468 = vmatprep.subr.mxu0 0.0
        %1469 = vmatpush2.msra.mxu0 0.0
        %1470 = vmatprep.subr.mxu0 0.0
        %1471 = vmatpush2.msra.mxu0 0.0
        %1472 = vmatprep.subr.mxu0 0.0
        %1473 = vmatpush2.msra.mxu0 0.0
        %1474 = vmatprep.subr.mxu0 0.0
        %1475 = vmatpush2.msra.mxu0 0.0
        %1476 = vmatprep.subr.mxu0 0.0
        %1477 = vmatpush2.msra.mxu0 0.0
        %1478 = vmatprep.subr.mxu0 0.0
        %1479 = vmatpush2.msra.mxu0 0.0
        %1480 = vmatprep.mubr.f32.mxu0 0.0
        %1481 = vmatmul.mubr.f32.gmra.mxu0 %v1414
        %v1482 = vpop.f32.mrf.mxu0
        %v1483 = vadd.f32 0.0, %v1482
        %v1484 = vpop.f32.mrf.mxu0
        %1485 = vdwg.mxu0
        %v1486 = vrcp.pop %v1184
        %v1487 = vmul.f32 %v1264, %v1486
        %v1488 = vrcp.pop %v1187
        %v1489 = vmul.f32 %v1337, %v1488
        %v1490 = vrcp.pop %v1190
        %v1491 = vmul.f32 %v1410, %v1490
        %v1492 = vrcp.pop %v1193
        %v1493 = vmul.f32 %v1483, %v1492
        %v1494 = vcombine.low %v1487, %v1491
        %v1495 = vcombine.high %v1487, %v1491
        %v1497 = vunpack.c.l.s4 1983009808
        %v1498 = vunpack.c.0.s8 %v1497
        %v1499 = vlaneseq
        %v1500 = vshrl.u32 %v1499, 7
        %v1501 = vsub.s32 %v1498, %v1500
        %v1502 = vrot.slane %v1494, %v1501
        %v1504 = vunpack.c.l.s4 1983009808
        %v1505 = vunpack.c.0.s8 %v1504
        %v1506 = vlaneseq
        %v1507 = vshrl.u32 %v1506, 7
        %v1508 = vsub.s32 %v1505, %v1507
        %v1509 = vrot.slane %v1495, %v1508
        %v1510 = vcombine.low %v1489, %v1493
        %v1511 = vcombine.high %v1489, %v1493
        %v1513 = vunpack.c.l.s4 1983009808
        %v1514 = vunpack.c.0.s8 %v1513
        %v1515 = vlaneseq
        %v1516 = vshrl.u32 %v1515, 7
        %v1517 = vsub.s32 %v1514, %v1516
        %v1518 = vrot.slane %v1510, %v1517
        %v1520 = vunpack.c.l.s4 1983009808
        %v1521 = vunpack.c.0.s8 %v1520
        %v1522 = vlaneseq
        %v1523 = vshrl.u32 %v1522, 7
        %v1524 = vsub.s32 %v1521, %v1523
        %v1525 = vrot.slane %v1511, %v1524
        %v1526 = vcombine.low %v1502, %v1518
        %v1527 = vcombine.high %v1502, %v1518
        %v1529 = vunpack.c.l.s4 1934713408
        %v1530 = vunpack.c.0.s8 %v1529
        %v1531 = vlaneseq
        %v1532 = vshrl.u32 %v1531, 7
        %v1533 = vsub.s32 %v1530, %v1532
        %v1534 = vrot.slane %v1526, %v1533
        %v1536 = vunpack.c.l.s4 1934713408
        %v1537 = vunpack.c.0.s8 %v1536
        %v1538 = vlaneseq
        %v1539 = vshrl.u32 %v1538, 7
        %v1540 = vsub.s32 %v1537, %v1539
        %v1541 = vrot.slane %v1527, %v1540
        %v1542 = vcombine.low %v1509, %v1525
        %v1543 = vcombine.high %v1509, %v1525
        %v1545 = vunpack.c.l.s4 1934713408
        %v1546 = vunpack.c.0.s8 %v1545
        %v1547 = vlaneseq
        %v1548 = vshrl.u32 %v1547, 7
        %v1549 = vsub.s32 %v1546, %v1548
        %v1550 = vrot.slane %v1542, %v1549
        %v1552 = vunpack.c.l.s4 1934713408
        %v1553 = vunpack.c.0.s8 %v1552
        %v1554 = vlaneseq
        %v1555 = vshrl.u32 %v1554, 7
        %v1556 = vsub.s32 %v1553, %v1555
        %v1557 = vrot.slane %v1543, %v1556
        %v1558 = vcombine.high %v1534, 0.0
        %v1559 = vcombine.high %v1541, 0.0
        %v1560 = vcombine.high %v1550, 0.0
        %v1561 = vcombine.high %v1557, 0.0
        %v1562 = vcombine.low %v1534, %v1541
        %v1564 = vunpack.c.l.s4 1983009808
        %v1565 = vunpack.c.0.s8 %v1564
        %v1566 = vlaneseq
        %v1567 = vshrl.u32 %v1566, 7
        %v1568 = vsub.s32 %v1565, %v1567
        %v1569 = vrot.slane %v1562, %v1568
        %v1570 = vcombine.low %v1558, %v1559
        %v1572 = vunpack.c.l.s4 1983009808
        %v1573 = vunpack.c.0.s8 %v1572
        %v1574 = vlaneseq
        %v1575 = vshrl.u32 %v1574, 7
        %v1576 = vsub.s32 %v1573, %v1575
        %v1577 = vrot.slane %v1570, %v1576
        %v1578 = vcombine.low %v1550, %v1557
        %v1580 = vunpack.c.l.s4 1983009808
        %v1581 = vunpack.c.0.s8 %v1580
        %v1582 = vlaneseq
        %v1583 = vshrl.u32 %v1582, 7
        %v1584 = vsub.s32 %v1581, %v1583
        %v1585 = vrot.slane %v1578, %v1584
        %v1586 = vcombine.low %v1560, %v1561
        %v1588 = vunpack.c.l.s4 1983009808
        %v1589 = vunpack.c.0.s8 %v1588
        %v1590 = vlaneseq
        %v1591 = vshrl.u32 %v1590, 7
        %v1592 = vsub.s32 %v1589, %v1591
        %v1593 = vrot.slane %v1586, %v1592
        %v1594 = vcombine.low %v1569, %v1577
        %v1595 = vcombine.high %v1569, %v1577
        %v1597 = vunpack.c.l.s4 1934713408
        %v1598 = vunpack.c.0.s8 %v1597
        %v1599 = vlaneseq
        %v1600 = vshrl.u32 %v1599, 7
        %v1601 = vsub.s32 %v1598, %v1600
        %v1602 = vrot.slane %v1594, %v1601
        %v1604 = vunpack.c.l.s4 1934713408
        %v1605 = vunpack.c.0.s8 %v1604
        %v1606 = vlaneseq
        %v1607 = vshrl.u32 %v1606, 7
        %v1608 = vsub.s32 %v1605, %v1607
        %v1609 = vrot.slane %v1595, %v1608
        %v1610 = vcombine.low %v1585, %v1593
        %v1611 = vcombine.high %v1585, %v1593
        %v1613 = vunpack.c.l.s4 1934713408
        %v1614 = vunpack.c.0.s8 %v1613
        %v1615 = vlaneseq
        %v1616 = vshrl.u32 %v1615, 7
        %v1617 = vsub.s32 %v1614, %v1616
        %v1618 = vrot.slane %v1610, %v1617
        %v1620 = vunpack.c.l.s4 1934713408
        %v1621 = vunpack.c.0.s8 %v1620
        %v1622 = vlaneseq
        %v1623 = vshrl.u32 %v1622, 7
        %v1624 = vsub.s32 %v1621, %v1623
        %v1625 = vrot.slane %v1611, %v1624
        %v1626 = vcombine.low %v1602, %v1618
        %v1627 = vcombine.high %v1602, %v1618
        %v1628 = vcombine.low %v1609, %v1625
        %v1629 = vcombine.high %v1609, %v1625
        %1631 = vrot.lane.b32.xlu0 %v1627, 8
        %v1632 = vpop.permute.xlu0 %1631
        %1635 = vrot.lane.b32.xlu0 %v1628, 16
        %v1636 = vpop.permute.xlu0 %1635
        %1639 = vrot.lane.b32.xlu0 %v1629, 24
        %v1640 = vpop.permute.xlu0 %1639
        %v1642 = vsel %vm853, %v1626, %v1632
        %vm1643 = vcmask 130048
        %v1644 = vsel %vm1643, %v1642, %v1636
        %vm1645 = vcmask 195584
        %v1646 = vsel %vm1645, %v1644, %v1640
        %v1647 = vld [vmem:[#allocation2] sm:$0xff]
        %v1648 = vld [vmem:[#allocation8] sm:$0xff]
        %v1649 = vld [vmem:[#allocation8 + $0x8] sm:$0xff]
        %v1650 = vld [vmem:[#allocation8 + $0x10] sm:$0xff]
        %v1651 = vld [vmem:[#allocation8 + $0x18] sm:$0xff]
        %v1653 = vsel %vm329, %v1646, 0
        %1655 = vmatprep.subr.mxu0 0.0
        %1656 = vmatpush1.msra.mxu0 0.0
        %1657 = vmatprep.subr.mxu0 0.0
        %1658 = vmatpush1.msra.mxu0 0.0
        %1659 = vmatprep.subr.mxu0 0.0
        %1660 = vmatpush1.msra.mxu0 0.0
        %1661 = vmatprep.subr.mxu0 0.0
        %1662 = vmatpush1.msra.mxu0 0.0
        %1663 = vmatprep.subr.mxu0 0.0
        %1664 = vmatpush1.msra.mxu0 0.0
        %1665 = vmatprep.subr.mxu0 0.0
        %1666 = vmatpush1.msra.mxu0 0.0
        %1667 = vmatprep.subr.mxu0 0.0
        %1668 = vmatpush1.msra.mxu0 0.0
        %1669 = vmatprep.subr.mxu0 0.0
        %1670 = vmatpush1.msra.mxu0 0.0
        %1671 = vmatprep.subr.mxu0 0.0
        %1672 = vmatpush1.msra.mxu0 0.0
        %1673 = vmatprep.subr.mxu0 0.0
        %1674 = vmatpush1.msra.mxu0 0.0
        %1675 = vmatprep.subr.mxu0 0.0
        %1676 = vmatpush1.msra.mxu0 0.0
        %1677 = vmatprep.subr.mxu0 0.0
        %1678 = vmatpush1.msra.mxu0 0.0
        %1679 = vmatprep.subr.mxu0 0.0
        %1680 = vmatpush1.msra.mxu0 %v1651
        %1681 = vmatprep.subr.mxu0 0.0
        %1682 = vmatpush1.msra.mxu0 %v1650
        %1683 = vmatprep.subr.mxu0 0.0
        %1684 = vmatpush1.msra.mxu0 %v1649
        %1685 = vmatprep.subr.mxu0 0.0
        %1686 = vmatpush1.msra.mxu0 %v1648
        %1687 = vmatprep.subr.mxu0 0.0
        %1688 = vmatpush2.msra.mxu0 0.0
        %1689 = vmatprep.subr.mxu0 0.0
        %1690 = vmatpush2.msra.mxu0 0.0
        %1691 = vmatprep.subr.mxu0 0.0
        %1692 = vmatpush2.msra.mxu0 0.0
        %1693 = vmatprep.subr.mxu0 0.0
        %1694 = vmatpush2.msra.mxu0 0.0
        %1695 = vmatprep.subr.mxu0 0.0
        %1696 = vmatpush2.msra.mxu0 0.0
        %1697 = vmatprep.subr.mxu0 0.0
        %1698 = vmatpush2.msra.mxu0 0.0
        %1699 = vmatprep.subr.mxu0 0.0
        %1700 = vmatpush2.msra.mxu0 0.0
        %1701 = vmatprep.subr.mxu0 0.0
        %1702 = vmatpush2.msra.mxu0 0.0
        %1703 = vmatprep.subr.mxu0 0.0
        %1704 = vmatpush2.msra.mxu0 0.0
        %1705 = vmatprep.subr.mxu0 0.0
        %1706 = vmatpush2.msra.mxu0 0.0
        %1707 = vmatprep.subr.mxu0 0.0
        %1708 = vmatpush2.msra.mxu0 0.0
        %1709 = vmatprep.subr.mxu0 0.0
        %1710 = vmatpush2.msra.mxu0 0.0
        %1711 = vmatprep.subr.mxu0 0.0
        %1712 = vmatpush2.msra.mxu0 0.0
        %1713 = vmatprep.subr.mxu0 0.0
        %1714 = vmatpush2.msra.mxu0 0.0
        %1715 = vmatprep.subr.mxu0 0.0
        %1716 = vmatpush2.msra.mxu0 0.0
        %1717 = vmatprep.subr.mxu0 0.0
        %1718 = vmatpush2.msra.mxu0 0.0
        %1719 = vmatprep.mubr.f32.mxu0 0.0
        %1720 = vmatmul.mubr.f32.gmra.mxu0 %v1653
        %v1721 = vpop.f32.mrf.mxu0
        %v1722 = vadd.f32 0.0, %v1721
        %v1723 = vpop.f32.mrf.mxu0
        %1724 = vdwg.mxu0
        %v1725 = vadd.f32 %v1647, %v1722
        %1726 = vst.msk [vmem:[#allocation2] sm:$0xff] %vm329, %v1725
        // Predicated region
        $region57: #{tpu_custom_call.1} parent=39 // pred_check
          %p1727 = pneg %p311
        $region58: #{tpu_custom_call.1} parent=39 // pred_check_branch
          %1729 = sbr.rel (%p1727) target = $region60
        $region59: #{tpu_custom_call.1} parent=39 // pred_region
          %v1730 = vld [vmem:[#allocation2] sm:$0xff]
          %v1731 = vld [vmem:[%s4] sm:$0x1]
          %v1733 = vlaneseq
          %v1734 = vshrl.u32 %v1733, 7
          %v1735 = vsub.s32 0, %v1734
          %v1736 = vrot.slane %v1731, %v1735
          %v1738 = vadd.f32 %v1730, %v1736
          %1739 = vst.msk [vmem:[%s307] sm:$0xff] %vm329, %v1738
        $region60: #{tpu_custom_call.1} parent=39 // pred_fallthru
          _
        %s1740 = sand.u32 %s168, 1
        %s1741 = scalar_lea.sflag [#allocation5], %s1740
        %s1742 = sand.u32 %s168, 1
        %s1743 = smul.addr %s1742, 8
        %s1744 = scalar_lea.vmem [#allocation9], %s1743
        // Predicated region
        $region61: #{tpu_custom_call.1} parent=39 // pred_check
          %p1745 = pneg %p178
        $region62: #{tpu_custom_call.1} parent=39 // pred_check_branch
          %1747 = sbr.rel (%p1745) target = $region64
        $region63: #{tpu_custom_call.1} parent=39 // pred_region
          %s1749 = ssub.s32 128, 128
          %1750 = vsyncadd %s1741, %s1749
          %s1751 = smul.addr %s27, 128
          %s1752 = scalar_lea.hbm %s5, %s1751
          %s1754 = sshll.u32 %s1744, 4
          %s1755 = int_to_ptr.vmem [resolvable:$true] %s1754
          %1757 = dma.vmem_to_hbm [thread:$0]  %s1755, 128, %s1752, %s1741
        $region64: #{tpu_custom_call.1} parent=39 // pred_fallthru
          _
      $region40: #{tpu_custom_call.1} parent=5 // pred_fallthru
        _
      %p1758 = scmp.le.s32.totalorder 2, %s18
      // Predicated region
      $region65: #{tpu_custom_call.1} parent=5 // pred_check
        %p1759 = pneg %p1758
      $region66: #{tpu_custom_call.1} parent=5 // pred_check_branch
        %1761 = sbr.rel (%p1759) target = $region68
      $region67: #{tpu_custom_call.1} parent=5 // pred_region
        %s1762 = ssub.s32 %s18, 2
        // Predicated region
        $region69: #{tpu_custom_call.1} parent=67 // pred_check
          %p1763 = pneg %p184
        $region70: #{tpu_custom_call.1} parent=67 // pred_check_branch
          %1765 = sbr.rel (%p1763) target = $region72
        $region71: #{tpu_custom_call.1} parent=67 // pred_region
          %s1766 = sand.u32 %s169, 1
          %s1767 = scalar_lea.sflag [#allocation5], %s1766
          %s1768 = sand.u32 %s169, 1
          %s1769 = smul.addr %s1768, 8
          %s1770 = scalar_lea.vmem [#allocation9], %s1769
          %1771 = dma.done %s1767, 128
        $region72: #{tpu_custom_call.1} parent=67 // pred_fallthru
          _
      $region68: #{tpu_custom_call.1} parent=5 // pred_fallthru
        _
    $region6: #{tpu_custom_call.1} parent=1 // loop_footer
      %s22 = sadd.s32 1, %s18
    $region7: #{tpu_custom_call.1} parent=1 // loop_footer_branch
      %17 = sbr.rel target = $region3
    $region8: #{tpu_custom_call.1} parent=1 // loop_exit
      _
    %1772 = vsyncpa [#allocation4], 1
    %s1773 = scalar_lea.sflag [#allocation4], 1
    %1774 = vsyncpa %s1773, 1
    %1775 = vsyncpa [#allocation7], 1
    %1776 = vsyncpa [#allocation5], 1
    %s1777 = scalar_lea.sflag [#allocation5], 1
    %1778 = vsyncpa %s1777, 1

</llo_original>
